<compile_context>
chip_gen: v7x
topology: tpu7x:2x2x1
jax: 0.10.0
libtpu: 0.0.40
codegen_flags: <defaults>
</compile_context>

<pallas_src>
import math
from functools import partial

import jax
import jax.numpy as jnp
from jax.experimental import pallas as pl
from jax.experimental.pallas import tpu as pltpu

EPS = 1e-5  # nn.LayerNorm default eps

_VEC_KEYS = ("bqkv", "bo", "b1", "b2", "ga", "ba", "gf", "bf")


def _layer_norm(x, gamma, beta):
    mu = jnp.mean(x, axis=-1, keepdims=True)
    var = jnp.mean((x - mu) ** 2, axis=-1, keepdims=True)
    return (x - mu) * jax.lax.rsqrt(var + EPS) * gamma + beta


def positional_encoding(seq_len, d_model, dtype=jnp.float32):
    """Standard sinusoidal PE, shape (seq_len, d_model)."""
    pos = jnp.arange(seq_len, dtype=jnp.float32)[:, None]
    i = jnp.arange(0, d_model, 2, dtype=jnp.float32)
    div = jnp.exp(-(jnp.log(10000.0) / d_model) * i)
    pe = jnp.zeros((seq_len, d_model), jnp.float32)
    pe = pe.at[:, 0::2].set(jnp.sin(pos * div))
    pe = pe.at[:, 1::2].set(jnp.cos(pos * div)[:, : d_model // 2])
    return pe.astype(dtype)


def _encoder_kernel(x_ref, pe_ref, vec_ref, wqkv_ref, wo_ref, w1_ref, w2_ref,
                    o_ref, act_ref, ctx_ref, *, num_heads):
    """One (batch_tile, layer) grid step: apply layer `l` to the resident activation."""
    layer = pl.program_id(1)
    n_layers = pl.num_programs(1)

    TB, S, D = x_ref.shape
    M = TB * S
    F = w1_ref.shape[1]
    H = num_heads
    Dh = D // H
    scale = 1.0 / math.sqrt(Dh)
    mdt = wqkv_ref.dtype                      # MXU input dtype (f32 or bf16)

    # First layer step for this batch tile: load x, add positional encoding,
    # flatten to (M, D) and park in the resident f32 scratch.
    @pl.when(layer == 0)
    def _():
        xin = (x_ref[...].astype(jnp.float32)
               + pe_ref[...].astype(jnp.float32)[None])
        act_ref[...] = xin.reshape(M, D)

    x = act_ref[...]                          # (M, D) f32, carried across layers

    # Packed per-layer vectors: one DMA, unpacked by static slices.
    vec = vec_ref[...].astype(jnp.float32)    # (8, VMAX)
    bqkv = vec[0:1, :3 * D]
    bo = vec[1:2, :D]
    b1 = vec[2:3, :F]
    b2 = vec[3:4, :D]
    ga = vec[4:5, :D]
    ba = vec[5:6, :D]
    gf = vec[6:7, :D]
    bf = vec[7:8, :D]

    # ---- multi-head self-attention --------------------------------------
    # Fused QKV projection on the full (M, D) tile: one big MXU matmul.
    qkv = jnp.dot(x.astype(mdt), wqkv_ref[...],
                  preferred_element_type=jnp.float32) + bqkv        # (M, 3D)

    # Per (batch element, head) attention; head contexts land in their lane
    # slice of ctx_ref so the output projection is ONE full-K matmul below.
    for b in range(TB):                        # static unroll (small TB*H)
        r0 = b * S
        for h in range(H):
            c0 = h * Dh
            qh = qkv[r0:r0 + S, c0:c0 + Dh].astype(mdt)
            kh = qkv[r0:r0 + S, D + c0:D + c0 + Dh].astype(mdt)
            vh = qkv[r0:r0 + S, 2 * D + c0:2 * D + c0 + Dh].astype(mdt)
            s = jnp.dot(qh, kh.T, preferred_element_type=jnp.float32) * scale
            s = s - jnp.max(s, axis=-1, keepdims=True)
            e = jnp.exp(s)
            # Exact reciprocal of the (S,1) denominator (parity with torch divide).
            p = e * pl.reciprocal(jnp.sum(e, axis=-1, keepdims=True), approx=False)
            oh = jnp.dot(p.astype(mdt), vh, preferred_element_type=jnp.float32)
            ctx_ref[r0:r0 + S, c0:c0 + Dh] = oh

    # Single K=D output projection over the whole (M, D) context.
    attn = jnp.dot(ctx_ref[...].astype(mdt), wo_ref[...],
                   preferred_element_type=jnp.float32) + bo

    # Residual + post LayerNorm (attn_norm).
    h1 = _layer_norm(attn + x, ga, ba)

    # ---- feed-forward (Dropout == identity in eval mode) ----------------
    ff = jnp.dot(h1.astype(mdt), w1_ref[...],
                 preferred_element_type=jnp.float32) + b1
    ff = jnp.maximum(ff, 0.0)                                        # ReLU
    ff = jnp.dot(ff.astype(mdt), w2_ref[...],
                 preferred_element_type=jnp.float32) + b2

    out = _layer_norm(ff + h1, gf, bf)

    # Carry to next layer except on the last; write HBM output only once.
    @pl.when(layer != n_layers - 1)
    def _():
        act_ref[...] = out

    @pl.when(layer == n_layers - 1)
    def _():
        o_ref[...] = out.reshape(TB, S, D).astype(o_ref.dtype)


def _pick_batch_block(B, S, target_m=512):
    """Largest divisor of B with TB*S <= target_m (fills the MXU M dimension)."""
    best = 1
    for tb in range(1, B + 1):
        if B % tb == 0 and tb * S <= target_m:
            best = tb
    return best


def transformer_encoder(x, params, num_heads, *, batch_block=None,
                        weight_dtype=None, interpret=False):
    """x: (B, S, D). params: per-layer params stacked on a leading layer axis."""
    B, S, D = x.shape
    L, _, F = params["w1"].shape
    TB = batch_block or _pick_batch_block(B, S)
    assert B % TB == 0 and D % num_heads == 0

    # Optional one-time weight cast (bf16 streaming halves weight DMA bytes).
    wdt = weight_dtype or params["wqkv"].dtype
    wqkv = params["wqkv"].astype(wdt)
    wo = params["wo"].astype(wdt)
    w1 = params["w1"].astype(wdt)
    w2 = params["w2"].astype(wdt)

    # Pack the 8 small per-layer vectors into one (L, 8, VMAX) slab.
    VMAX = max(3 * D, F)
    def _pad(v):
        v = v.reshape(L, -1).astype(jnp.float32)
        return jnp.pad(v, ((0, 0), (0, VMAX - v.shape[-1])))
    vecs = jnp.stack([_pad(params[k]) for k in _VEC_KEYS], axis=1)   # (L, 8, VMAX)

    pe = positional_encoding(S, D, jnp.float32)

    in_specs = [
        pl.BlockSpec((TB, S, D), lambda b, l: (b, 0, 0)),            # x tile
        pl.BlockSpec((S, D), lambda b, l: (0, 0)),                   # pos enc
        pl.BlockSpec((None, 8, VMAX), lambda b, l: (l, 0, 0)),       # packed vectors
        pl.BlockSpec((None, D, 3 * D), lambda b, l: (l, 0, 0)),      # wqkv
        pl.BlockSpec((None, D, D), lambda b, l: (l, 0, 0)),          # wo
        pl.BlockSpec((None, D, F), lambda b, l: (l, 0, 0)),          # w1
        pl.BlockSpec((None, F, D), lambda b, l: (l, 0, 0)),          # w2
    ]

    # Rough VMEM budget: double-buffered weight slab + activation/context
    # scratch + x/out tiles; clamp to 64 MiB so it also fits a v7x TC.
    itemsize = jnp.dtype(wdt).itemsize
    slab = (D * 3 * D + D * D + D * F + F * D) * itemsize
    est = (2 * slab + 2 * 8 * VMAX * 4 + 2 * TB * S * D * 4
           + 4 * TB * S * D * 4 + (1 << 20))
    vmem_limit = int(min(64 << 20, max(32 << 20, est)))

    return pl.pallas_call(
        partial(_encoder_kernel, num_heads=num_heads),
        out_shape=jax.ShapeDtypeStruct((B, S, D), x.dtype),
        grid=(B // TB, L),
        in_specs=in_specs,
        out_specs=pl.BlockSpec((TB, S, D), lambda b, l: (b, 0, 0)),
        scratch_shapes=[pltpu.VMEM((TB * S, D), jnp.float32),   # resident activation
                        pltpu.VMEM((TB * S, D), jnp.float32)],  # attention context
        compiler_params=pltpu.CompilerParams(
            dimension_semantics=("parallel", "arbitrary"),
            vmem_limit_bytes=vmem_limit),
        interpret=interpret,
    )(x, pe, vecs, wqkv, wo, w1, w2)


def init_params(key, num_layers, encoder_dim, ffn_expansion, dtype=jnp.float32):
    D = encoder_dim
    F = D * ffn_expansion
    L = num_layers
    ks = jax.random.split(key, 10)
    p = {
        "wqkv": 0.05 * jax.random.normal(ks[0], (L, D, 3 * D), jnp.float32),
        "bqkv": 0.02 * jax.random.normal(ks[1], (L, 3 * D), jnp.float32),
        "wo":   0.05 * jax.random.normal(ks[2], (L, D, D), jnp.float32),
        "bo":   0.02 * jax.random.normal(ks[3], (L, D), jnp.float32),
        "ga":   1.0 + 0.02 * jax.random.normal(ks[4], (L, D), jnp.float32),
        "ba":   0.02 * jax.random.normal(ks[5], (L, D), jnp.float32),
        "w1":   0.05 * jax.random.normal(ks[6], (L, D, F), jnp.float32),
        "b1":   0.02 * jax.random.normal(ks[7], (L, F), jnp.float32),
        "w2":   0.05 * jax.random.normal(ks[8], (L, F, D), jnp.float32),
        "b2":   0.02 * jax.random.normal(ks[9], (L, D), jnp.float32),
        "gf":   jnp.ones((L, D), jnp.float32),
        "bf":   jnp.zeros((L, D), jnp.float32),
    }
    return {k: v.astype(dtype) for k, v in p.items()}


def transformer_encoder_ref(x, params, num_heads):
    """Pure-JAX reference (same math, exact softmax divide)."""
    B, S, D = x.shape
    H = num_heads
    Dh = D // H
    x = x.astype(jnp.float32) + positional_encoding(S, D)[None]
    L = params["wqkv"].shape[0]
    for l in range(L):
        p = {k: params[k][l].astype(jnp.float32) for k in params}
        qkv = x @ p["wqkv"] + p["bqkv"]
        q, k, v = qkv[..., :D], qkv[..., D:2 * D], qkv[..., 2 * D:]
        q = q.reshape(B, S, H, Dh).transpose(0, 2, 1, 3)
        k = k.reshape(B, S, H, Dh).transpose(0, 2, 1, 3)
        v = v.reshape(B, S, H, Dh).transpose(0, 2, 1, 3)
        s = jnp.einsum("bhqd,bhkd->bhqk", q, k) / math.sqrt(Dh)
        a = jnp.einsum("bhqk,bhkd->bhqd", jax.nn.softmax(s, axis=-1), v)
        a = a.transpose(0, 2, 1, 3).reshape(B, S, D) @ p["wo"] + p["bo"]
        x = _layer_norm(a + x, p["ga"], p["ba"])
        ff = jnp.maximum(x @ p["w1"] + p["b1"], 0.0) @ p["w2"] + p["b2"]
        x = _layer_norm(ff + x, p["gf"], p["bf"])
    return x


if __name__ == "__main__":
    # Small config consistent with the module: encoder_dim=32, 4 heads,
    # ffn_expansion=4, 2 layers, batch=2, seq=8.
    B, S, D = 2, 8, 32
    NUM_HEADS = 4
    FFN_EXPANSION = 4
    NUM_LAYERS = 2

    key = jax.random.PRNGKey(0)
    kx, kp = jax.random.split(key)
    x = jax.random.normal(kx, (B, S, D), jnp.float32)
    params = init_params(kp, NUM_LAYERS, D, FFN_EXPANSION)
    # For v6e/v7x throughput pass weight_dtype=jnp.bfloat16 (f32 accumulation kept).

    out = transformer_encoder(x, params, NUM_HEADS)
    out = jax.block_until_ready(out)

    assert out.shape == (B, S, D) and out.dtype == jnp.float32
    assert bool(jnp.all(jnp.isfinite(out)))

    ref = transformer_encoder_ref(x, params, NUM_HEADS)
    max_err = float(jnp.max(jnp.abs(out - ref)))
    assert bool(jnp.allclose(out, ref.astype(out.dtype), atol=2e-3, rtol=2e-3)), max_err
    print("KERNEL_OK")
</pallas_src>

<mosaic_0001>
module attributes {stable_mosaic.version = 11 : i64} {
  func.func @_encoder_kernel(%arg0: i32, %arg1: i32, %arg2: memref<2x8x32xf32, #tpu.memory_space<vmem>>, %arg3: memref<8x32xf32, #tpu.memory_space<vmem>>, %arg4: memref<1x8x128xf32, #tpu.memory_space<vmem>>, %arg5: memref<1x32x96xf32, #tpu.memory_space<vmem>>, %arg6: memref<1x32x32xf32, #tpu.memory_space<vmem>>, %arg7: memref<1x32x128xf32, #tpu.memory_space<vmem>>, %arg8: memref<1x128x32xf32, #tpu.memory_space<vmem>>, %arg9: memref<2x8x32xf32, #tpu.memory_space<vmem>>, %arg10: memref<16x32xf32, #tpu.memory_space<vmem>>, %arg11: memref<16x32xf32, #tpu.memory_space<vmem>>) attributes {dimension_semantics = [#tpu.dimension_semantics<parallel>, #tpu.dimension_semantics<arbitrary>], iteration_bounds = array<i64: 1, 2>, scalar_prefetch = 0 : i64, scratch_operands = 2 : i64, tpu.core_type = #tpu.core_type<tc>, window_params = [{transform_indices = @transform_0, window_bounds = array<i64: 2, 8, 32>}, {pipeline_mode = #tpu.pipeline_mode<synchronous>, transform_indices = @transform_1, window_bounds = array<i64: 8, 32>}, {transform_indices = @transform_2, window_bounds = array<i64: 1, 8, 128>}, {transform_indices = @transform_3, window_bounds = array<i64: 1, 32, 96>}, {transform_indices = @transform_4, window_bounds = array<i64: 1, 32, 32>}, {transform_indices = @transform_5, window_bounds = array<i64: 1, 32, 128>}, {transform_indices = @transform_6, window_bounds = array<i64: 1, 128, 32>}, {transform_indices = @transform_7, window_bounds = array<i64: 2, 8, 32>}]} {
    %c0_i32 = arith.constant 0 : i32
    %0 = arith.cmpi eq, %arg1, %c0_i32 : i32
    %1 = arith.extui %0 : i1 to i32
    %c0_i32_0 = arith.constant 0 : i32
    %2 = arith.cmpi ne, %1, %c0_i32_0 : i32
    scf.if %2 {
      %c0_89 = arith.constant 0 : index
      %c0_90 = arith.constant 0 : index
      %c0_91 = arith.constant 0 : index
      %241 = vector.load %arg2[%c0_89, %c0_90, %c0_91] : memref<2x8x32xf32, #tpu.memory_space<vmem>>, vector<2x8x32xf32>
      %c0_92 = arith.constant 0 : index
      %c0_93 = arith.constant 0 : index
      %242 = vector.load %arg3[%c0_92, %c0_93] : memref<8x32xf32, #tpu.memory_space<vmem>>, vector<8x32xf32>
      %243 = vector.shape_cast %242 : vector<8x32xf32> to vector<1x8x32xf32>
      %244 = vector.broadcast %243 : vector<1x8x32xf32> to vector<2x8x32xf32>
      %245 = arith.addf %241, %244 : vector<2x8x32xf32>
      %246 = vector.shape_cast %245 : vector<2x8x32xf32> to vector<16x32xf32>
      %c0_94 = arith.constant 0 : index
      %c0_95 = arith.constant 0 : index
      %247 = vector.load %arg10[%c0_94, %c0_95] : memref<16x32xf32, #tpu.memory_space<vmem>>, vector<16x32xf32>
      tpu.vector_store %arg10[%c0_94, %c0_95], %246 {strides = array<i32>} : memref<16x32xf32, #tpu.memory_space<vmem>>, vector<16x32xf32>,
    } else {
    }
    %c0 = arith.constant 0 : index
    %c0_1 = arith.constant 0 : index
    %3 = vector.load %arg10[%c0, %c0_1] : memref<16x32xf32, #tpu.memory_space<vmem>>, vector<16x32xf32>
    %c0_2 = arith.constant 0 : index
    %c0_3 = arith.constant 0 : index
    %c0_4 = arith.constant 0 : index
    %4 = vector.load %arg4[%c0_2, %c0_3, %c0_4] : memref<1x8x128xf32, #tpu.memory_space<vmem>>, vector<1x8x128xf32>
    %5 = vector.shape_cast %4 : vector<1x8x128xf32> to vector<8x128xf32>
    %6 = vector.extract_strided_slice %5 {offsets = [0, 0], sizes = [1, 96], strides = [1, 1]} : vector<8x128xf32> to vector<1x96xf32>
    %7 = vector.extract_strided_slice %5 {offsets = [1, 0], sizes = [1, 32], strides = [1, 1]} : vector<8x128xf32> to vector<1x32xf32>
    %8 = vector.extract_strided_slice %5 {offsets = [2, 0], sizes = [1, 128], strides = [1, 1]} : vector<8x128xf32> to vector<1x128xf32>
    %9 = vector.extract_strided_slice %5 {offsets = [3, 0], sizes = [1, 32], strides = [1, 1]} : vector<8x128xf32> to vector<1x32xf32>
    %10 = vector.extract_strided_slice %5 {offsets = [4, 0], sizes = [1, 32], strides = [1, 1]} : vector<8x128xf32> to vector<1x32xf32>
    %11 = vector.extract_strided_slice %5 {offsets = [5, 0], sizes = [1, 32], strides = [1, 1]} : vector<8x128xf32> to vector<1x32xf32>
    %12 = vector.extract_strided_slice %5 {offsets = [6, 0], sizes = [1, 32], strides = [1, 1]} : vector<8x128xf32> to vector<1x32xf32>
    %13 = vector.extract_strided_slice %5 {offsets = [7, 0], sizes = [1, 32], strides = [1, 1]} : vector<8x128xf32> to vector<1x32xf32>
    %c0_5 = arith.constant 0 : index
    %c0_6 = arith.constant 0 : index
    %c0_7 = arith.constant 0 : index
    %14 = vector.load %arg5[%c0_5, %c0_6, %c0_7] : memref<1x32x96xf32, #tpu.memory_space<vmem>>, vector<1x32x96xf32>
    %15 = vector.shape_cast %14 : vector<1x32x96xf32> to vector<32x96xf32>
    %cst = arith.constant dense<0.000000e+00> : vector<16x96xf32>
    %16 = tpu.matmul %3, %15, %cst {dimension_numbers = #tpu.dot_dimension_numbers<[1], [0], [0], [1], [0, 0, 1, 1], [], []>} : vector<16x32xf32>, vector<32x96xf32>, vector<16x96xf32> -> vector<16x96xf32>
    %17 = vector.broadcast %6 : vector<1x96xf32> to vector<16x96xf32>
    %18 = arith.addf %16, %17 : vector<16x96xf32>
    %19 = vector.extract_strided_slice %18 {offsets = [0, 0], sizes = [8, 8], strides = [1, 1]} : vector<16x96xf32> to vector<8x8xf32>
    %20 = vector.extract_strided_slice %18 {offsets = [0, 32], sizes = [8, 8], strides = [1, 1]} : vector<16x96xf32> to vector<8x8xf32>
    %21 = vector.extract_strided_slice %18 {offsets = [0, 64], sizes = [8, 8], strides = [1, 1]} : vector<16x96xf32> to vector<8x8xf32>
    %22 = tpu.transpose %20, [1, 0] : vector<8x8xf32> -> vector<8x8xf32>
    %cst_8 = arith.constant dense<0.000000e+00> : vector<8x8xf32>
    %23 = tpu.matmul %19, %22, %cst_8 {dimension_numbers = #tpu.dot_dimension_numbers<[1], [0], [0], [1], [0, 0, 1, 1], [], []>} : vector<8x8xf32>, vector<8x8xf32>, vector<8x8xf32> -> vector<8x8xf32>
    %cst_9 = arith.constant 0.353553385 : f32
    %24 = vector.broadcast %cst_9 : f32 to vector<8x8xf32>
    %25 = arith.mulf %23, %24 : vector<8x8xf32>
    %cst_10 = arith.constant dense<0xFF800000> : vector<8xf32>
    %26 = vector.multi_reduction <maximumf>, %25, %cst_10 [1] : vector<8x8xf32> to vector<8xf32>
    %27 = vector.shape_cast %26 : vector<8xf32> to vector<8x1xf32>
    %28 = vector.broadcast %27 : vector<8x1xf32> to vector<8x8xf32>
    %29 = arith.subf %25, %28 : vector<8x8xf32>
    %30 = math.exp %29 : vector<8x8xf32>
    %cst_11 = arith.constant dense<0.000000e+00> : vector<8xf32>
    %31 = vector.multi_reduction <add>, %30, %cst_11 [1] : vector<8x8xf32> to vector<8xf32>
    %32 = vector.shape_cast %31 : vector<8xf32> to vector<8x1xf32>
    %33 = tpu.reciprocal %32 : vector<8x1xf32> -> vector<8x1xf32>
    %34 = vector.broadcast %33 : vector<8x1xf32> to vector<8x8xf32>
    %35 = arith.mulf %30, %34 : vector<8x8xf32>
    %cst_12 = arith.constant dense<0.000000e+00> : vector<8x8xf32>
    %36 = tpu.matmul %35, %21, %cst_12 {dimension_numbers = #tpu.dot_dimension_numbers<[1], [0], [0], [1], [0, 0, 1, 1], [], []>} : vector<8x8xf32>, vector<8x8xf32>, vector<8x8xf32> -> vector<8x8xf32>
    %c0_13 = arith.constant 0 : index
    %c0_14 = arith.constant 0 : index
    %37 = vector.load %arg11[%c0_13, %c0_14] : memref<16x32xf32, #tpu.memory_space<vmem>>, vector<8x8xf32>
    tpu.vector_store %arg11[%c0_13, %c0_14], %36 {strides = array<i32>} : memref<16x32xf32, #tpu.memory_space<vmem>>, vector<8x8xf32>,
    %38 = vector.extract_strided_slice %18 {offsets = [0, 8], sizes = [8, 8], strides = [1, 1]} : vector<16x96xf32> to vector<8x8xf32>
    %39 = vector.extract_strided_slice %18 {offsets = [0, 40], sizes = [8, 8], strides = [1, 1]} : vector<16x96xf32> to vector<8x8xf32>
    %40 = vector.extract_strided_slice %18 {offsets = [0, 72], sizes = [8, 8], strides = [1, 1]} : vector<16x96xf32> to vector<8x8xf32>
    %41 = tpu.transpose %39, [1, 0] : vector<8x8xf32> -> vector<8x8xf32>
    %cst_15 = arith.constant dense<0.000000e+00> : vector<8x8xf32>
    %42 = tpu.matmul %38, %41, %cst_15 {dimension_numbers = #tpu.dot_dimension_numbers<[1], [0], [0], [1], [0, 0, 1, 1], [], []>} : vector<8x8xf32>, vector<8x8xf32>, vector<8x8xf32> -> vector<8x8xf32>
    %cst_16 = arith.constant 0.353553385 : f32
    %43 = vector.broadcast %cst_16 : f32 to vector<8x8xf32>
    %44 = arith.mulf %42, %43 : vector<8x8xf32>
    %cst_17 = arith.constant dense<0xFF800000> : vector<8xf32>
    %45 = vector.multi_reduction <maximumf>, %44, %cst_17 [1] : vector<8x8xf32> to vector<8xf32>
    %46 = vector.shape_cast %45 : vector<8xf32> to vector<8x1xf32>
    %47 = vector.broadcast %46 : vector<8x1xf32> to vector<8x8xf32>
    %48 = arith.subf %44, %47 : vector<8x8xf32>
    %49 = math.exp %48 : vector<8x8xf32>
    %cst_18 = arith.constant dense<0.000000e+00> : vector<8xf32>
    %50 = vector.multi_reduction <add>, %49, %cst_18 [1] : vector<8x8xf32> to vector<8xf32>
    %51 = vector.shape_cast %50 : vector<8xf32> to vector<8x1xf32>
    %52 = tpu.reciprocal %51 : vector<8x1xf32> -> vector<8x1xf32>
    %53 = vector.broadcast %52 : vector<8x1xf32> to vector<8x8xf32>
    %54 = arith.mulf %49, %53 : vector<8x8xf32>
    %cst_19 = arith.constant dense<0.000000e+00> : vector<8x8xf32>
    %55 = tpu.matmul %54, %40, %cst_19 {dimension_numbers = #tpu.dot_dimension_numbers<[1], [0], [0], [1], [0, 0, 1, 1], [], []>} : vector<8x8xf32>, vector<8x8xf32>, vector<8x8xf32> -> vector<8x8xf32>
    %c0_20 = arith.constant 0 : index
    %c8 = arith.constant 8 : index
    %56 = vector.load %arg11[%c0_20, %c8] : memref<16x32xf32, #tpu.memory_space<vmem>>, vector<8x8xf32>
    tpu.vector_store %arg11[%c0_20, %c8], %55 {strides = array<i32>} : memref<16x32xf32, #tpu.memory_space<vmem>>, vector<8x8xf32>,
    %57 = vector.extract_strided_slice %18 {offsets = [0, 16], sizes = [8, 8], strides = [1, 1]} : vector<16x96xf32> to vector<8x8xf32>
    %58 = vector.extract_strided_slice %18 {offsets = [0, 48], sizes = [8, 8], strides = [1, 1]} : vector<16x96xf32> to vector<8x8xf32>
    %59 = vector.extract_strided_slice %18 {offsets = [0, 80], sizes = [8, 8], strides = [1, 1]} : vector<16x96xf32> to vector<8x8xf32>
    %60 = tpu.transpose %58, [1, 0] : vector<8x8xf32> -> vector<8x8xf32>
    %cst_21 = arith.constant dense<0.000000e+00> : vector<8x8xf32>
    %61 = tpu.matmul %57, %60, %cst_21 {dimension_numbers = #tpu.dot_dimension_numbers<[1], [0], [0], [1], [0, 0, 1, 1], [], []>} : vector<8x8xf32>, vector<8x8xf32>, vector<8x8xf32> -> vector<8x8xf32>
    %cst_22 = arith.constant 0.353553385 : f32
    %62 = vector.broadcast %cst_22 : f32 to vector<8x8xf32>
    %63 = arith.mulf %61, %62 : vector<8x8xf32>
    %cst_23 = arith.constant dense<0xFF800000> : vector<8xf32>
    %64 = vector.multi_reduction <maximumf>, %63, %cst_23 [1] : vector<8x8xf32> to vector<8xf32>
    %65 = vector.shape_cast %64 : vector<8xf32> to vector<8x1xf32>
    %66 = vector.broadcast %65 : vector<8x1xf32> to vector<8x8xf32>
    %67 = arith.subf %63, %66 : vector<8x8xf32>
    %68 = math.exp %67 : vector<8x8xf32>
    %cst_24 = arith.constant dense<0.000000e+00> : vector<8xf32>
    %69 = vector.multi_reduction <add>, %68, %cst_24 [1] : vector<8x8xf32> to vector<8xf32>
    %70 = vector.shape_cast %69 : vector<8xf32> to vector<8x1xf32>
    %71 = tpu.reciprocal %70 : vector<8x1xf32> -> vector<8x1xf32>
    %72 = vector.broadcast %71 : vector<8x1xf32> to vector<8x8xf32>
    %73 = arith.mulf %68, %72 : vector<8x8xf32>
    %cst_25 = arith.constant dense<0.000000e+00> : vector<8x8xf32>
    %74 = tpu.matmul %73, %59, %cst_25 {dimension_numbers = #tpu.dot_dimension_numbers<[1], [0], [0], [1], [0, 0, 1, 1], [], []>} : vector<8x8xf32>, vector<8x8xf32>, vector<8x8xf32> -> vector<8x8xf32>
    %c0_26 = arith.constant 0 : index
    %c16 = arith.constant 16 : index
    %75 = vector.load %arg11[%c0_26, %c16] : memref<16x32xf32, #tpu.memory_space<vmem>>, vector<8x8xf32>
    tpu.vector_store %arg11[%c0_26, %c16], %74 {strides = array<i32>} : memref<16x32xf32, #tpu.memory_space<vmem>>, vector<8x8xf32>,
    %76 = vector.extract_strided_slice %18 {offsets = [0, 24], sizes = [8, 8], strides = [1, 1]} : vector<16x96xf32> to vector<8x8xf32>
    %77 = vector.extract_strided_slice %18 {offsets = [0, 56], sizes = [8, 8], strides = [1, 1]} : vector<16x96xf32> to vector<8x8xf32>
    %78 = vector.extract_strided_slice %18 {offsets = [0, 88], sizes = [8, 8], strides = [1, 1]} : vector<16x96xf32> to vector<8x8xf32>
    %79 = tpu.transpose %77, [1, 0] : vector<8x8xf32> -> vector<8x8xf32>
    %cst_27 = arith.constant dense<0.000000e+00> : vector<8x8xf32>
    %80 = tpu.matmul %76, %79, %cst_27 {dimension_numbers = #tpu.dot_dimension_numbers<[1], [0], [0], [1], [0, 0, 1, 1], [], []>} : vector<8x8xf32>, vector<8x8xf32>, vector<8x8xf32> -> vector<8x8xf32>
    %cst_28 = arith.constant 0.353553385 : f32
    %81 = vector.broadcast %cst_28 : f32 to vector<8x8xf32>
    %82 = arith.mulf %80, %81 : vector<8x8xf32>
    %cst_29 = arith.constant dense<0xFF800000> : vector<8xf32>
    %83 = vector.multi_reduction <maximumf>, %82, %cst_29 [1] : vector<8x8xf32> to vector<8xf32>
    %84 = vector.shape_cast %83 : vector<8xf32> to vector<8x1xf32>
    %85 = vector.broadcast %84 : vector<8x1xf32> to vector<8x8xf32>
    %86 = arith.subf %82, %85 : vector<8x8xf32>
    %87 = math.exp %86 : vector<8x8xf32>
    %cst_30 = arith.constant dense<0.000000e+00> : vector<8xf32>
    %88 = vector.multi_reduction <add>, %87, %cst_30 [1] : vector<8x8xf32> to vector<8xf32>
    %89 = vector.shape_cast %88 : vector<8xf32> to vector<8x1xf32>
    %90 = tpu.reciprocal %89 : vector<8x1xf32> -> vector<8x1xf32>
    %91 = vector.broadcast %90 : vector<8x1xf32> to vector<8x8xf32>
    %92 = arith.mulf %87, %91 : vector<8x8xf32>
    %cst_31 = arith.constant dense<0.000000e+00> : vector<8x8xf32>
    %93 = tpu.matmul %92, %78, %cst_31 {dimension_numbers = #tpu.dot_dimension_numbers<[1], [0], [0], [1], [0, 0, 1, 1], [], []>} : vector<8x8xf32>, vector<8x8xf32>, vector<8x8xf32> -> vector<8x8xf32>
    %c0_32 = arith.constant 0 : index
    %c24 = arith.constant 24 : index
    %94 = vector.load %arg11[%c0_32, %c24] : memref<16x32xf32, #tpu.memory_space<vmem>>, vector<8x8xf32>
    tpu.vector_store %arg11[%c0_32, %c24], %93 {strides = array<i32>} : memref<16x32xf32, #tpu.memory_space<vmem>>, vector<8x8xf32>,
    %95 = vector.extract_strided_slice %18 {offsets = [8, 0], sizes = [8, 8], strides = [1, 1]} : vector<16x96xf32> to vector<8x8xf32>
    %96 = vector.extract_strided_slice %18 {offsets = [8, 32], sizes = [8, 8], strides = [1, 1]} : vector<16x96xf32> to vector<8x8xf32>
    %97 = vector.extract_strided_slice %18 {offsets = [8, 64], sizes = [8, 8], strides = [1, 1]} : vector<16x96xf32> to vector<8x8xf32>
    %98 = tpu.transpose %96, [1, 0] : vector<8x8xf32> -> vector<8x8xf32>
    %cst_33 = arith.constant dense<0.000000e+00> : vector<8x8xf32>
    %99 = tpu.matmul %95, %98, %cst_33 {dimension_numbers = #tpu.dot_dimension_numbers<[1], [0], [0], [1], [0, 0, 1, 1], [], []>} : vector<8x8xf32>, vector<8x8xf32>, vector<8x8xf32> -> vector<8x8xf32>
    %cst_34 = arith.constant 0.353553385 : f32
    %100 = vector.broadcast %cst_34 : f32 to vector<8x8xf32>
    %101 = arith.mulf %99, %100 : vector<8x8xf32>
    %cst_35 = arith.constant dense<0xFF800000> : vector<8xf32>
    %102 = vector.multi_reduction <maximumf>, %101, %cst_35 [1] : vector<8x8xf32> to vector<8xf32>
    %103 = vector.shape_cast %102 : vector<8xf32> to vector<8x1xf32>
    %104 = vector.broadcast %103 : vector<8x1xf32> to vector<8x8xf32>
    %105 = arith.subf %101, %104 : vector<8x8xf32>
    %106 = math.exp %105 : vector<8x8xf32>
    %cst_36 = arith.constant dense<0.000000e+00> : vector<8xf32>
    %107 = vector.multi_reduction <add>, %106, %cst_36 [1] : vector<8x8xf32> to vector<8xf32>
    %108 = vector.shape_cast %107 : vector<8xf32> to vector<8x1xf32>
    %109 = tpu.reciprocal %108 : vector<8x1xf32> -> vector<8x1xf32>
    %110 = vector.broadcast %109 : vector<8x1xf32> to vector<8x8xf32>
    %111 = arith.mulf %106, %110 : vector<8x8xf32>
    %cst_37 = arith.constant dense<0.000000e+00> : vector<8x8xf32>
    %112 = tpu.matmul %111, %97, %cst_37 {dimension_numbers = #tpu.dot_dimension_numbers<[1], [0], [0], [1], [0, 0, 1, 1], [], []>} : vector<8x8xf32>, vector<8x8xf32>, vector<8x8xf32> -> vector<8x8xf32>
    %c8_38 = arith.constant 8 : index
    %c0_39 = arith.constant 0 : index
    %113 = vector.load %arg11[%c8_38, %c0_39] : memref<16x32xf32, #tpu.memory_space<vmem>>, vector<8x8xf32>
    tpu.vector_store %arg11[%c8_38, %c0_39], %112 {strides = array<i32>} : memref<16x32xf32, #tpu.memory_space<vmem>>, vector<8x8xf32>,
    %114 = vector.extract_strided_slice %18 {offsets = [8, 8], sizes = [8, 8], strides = [1, 1]} : vector<16x96xf32> to vector<8x8xf32>
    %115 = vector.extract_strided_slice %18 {offsets = [8, 40], sizes = [8, 8], strides = [1, 1]} : vector<16x96xf32> to vector<8x8xf32>
    %116 = vector.extract_strided_slice %18 {offsets = [8, 72], sizes = [8, 8], strides = [1, 1]} : vector<16x96xf32> to vector<8x8xf32>
    %117 = tpu.transpose %115, [1, 0] : vector<8x8xf32> -> vector<8x8xf32>
    %cst_40 = arith.constant dense<0.000000e+00> : vector<8x8xf32>
    %118 = tpu.matmul %114, %117, %cst_40 {dimension_numbers = #tpu.dot_dimension_numbers<[1], [0], [0], [1], [0, 0, 1, 1], [], []>} : vector<8x8xf32>, vector<8x8xf32>, vector<8x8xf32> -> vector<8x8xf32>
    %cst_41 = arith.constant 0.353553385 : f32
    %119 = vector.broadcast %cst_41 : f32 to vector<8x8xf32>
    %120 = arith.mulf %118, %119 : vector<8x8xf32>
    %cst_42 = arith.constant dense<0xFF800000> : vector<8xf32>
    %121 = vector.multi_reduction <maximumf>, %120, %cst_42 [1] : vector<8x8xf32> to vector<8xf32>
    %122 = vector.shape_cast %121 : vector<8xf32> to vector<8x1xf32>
    %123 = vector.broadcast %122 : vector<8x1xf32> to vector<8x8xf32>
    %124 = arith.subf %120, %123 : vector<8x8xf32>
    %125 = math.exp %124 : vector<8x8xf32>
    %cst_43 = arith.constant dense<0.000000e+00> : vector<8xf32>
    %126 = vector.multi_reduction <add>, %125, %cst_43 [1] : vector<8x8xf32> to vector<8xf32>
    %127 = vector.shape_cast %126 : vector<8xf32> to vector<8x1xf32>
    %128 = tpu.reciprocal %127 : vector<8x1xf32> -> vector<8x1xf32>
    %129 = vector.broadcast %128 : vector<8x1xf32> to vector<8x8xf32>
    %130 = arith.mulf %125, %129 : vector<8x8xf32>
    %cst_44 = arith.constant dense<0.000000e+00> : vector<8x8xf32>
    %131 = tpu.matmul %130, %116, %cst_44 {dimension_numbers = #tpu.dot_dimension_numbers<[1], [0], [0], [1], [0, 0, 1, 1], [], []>} : vector<8x8xf32>, vector<8x8xf32>, vector<8x8xf32> -> vector<8x8xf32>
    %c8_45 = arith.constant 8 : index
    %c8_46 = arith.constant 8 : index
    %132 = vector.load %arg11[%c8_45, %c8_46] : memref<16x32xf32, #tpu.memory_space<vmem>>, vector<8x8xf32>
    tpu.vector_store %arg11[%c8_45, %c8_46], %131 {strides = array<i32>} : memref<16x32xf32, #tpu.memory_space<vmem>>, vector<8x8xf32>,
    %133 = vector.extract_strided_slice %18 {offsets = [8, 16], sizes = [8, 8], strides = [1, 1]} : vector<16x96xf32> to vector<8x8xf32>
    %134 = vector.extract_strided_slice %18 {offsets = [8, 48], sizes = [8, 8], strides = [1, 1]} : vector<16x96xf32> to vector<8x8xf32>
    %135 = vector.extract_strided_slice %18 {offsets = [8, 80], sizes = [8, 8], strides = [1, 1]} : vector<16x96xf32> to vector<8x8xf32>
    %136 = tpu.transpose %134, [1, 0] : vector<8x8xf32> -> vector<8x8xf32>
    %cst_47 = arith.constant dense<0.000000e+00> : vector<8x8xf32>
    %137 = tpu.matmul %133, %136, %cst_47 {dimension_numbers = #tpu.dot_dimension_numbers<[1], [0], [0], [1], [0, 0, 1, 1], [], []>} : vector<8x8xf32>, vector<8x8xf32>, vector<8x8xf32> -> vector<8x8xf32>
    %cst_48 = arith.constant 0.353553385 : f32
    %138 = vector.broadcast %cst_48 : f32 to vector<8x8xf32>
    %139 = arith.mulf %137, %138 : vector<8x8xf32>
    %cst_49 = arith.constant dense<0xFF800000> : vector<8xf32>
    %140 = vector.multi_reduction <maximumf>, %139, %cst_49 [1] : vector<8x8xf32> to vector<8xf32>
    %141 = vector.shape_cast %140 : vector<8xf32> to vector<8x1xf32>
    %142 = vector.broadcast %141 : vector<8x1xf32> to vector<8x8xf32>
    %143 = arith.subf %139, %142 : vector<8x8xf32>
    %144 = math.exp %143 : vector<8x8xf32>
    %cst_50 = arith.constant dense<0.000000e+00> : vector<8xf32>
    %145 = vector.multi_reduction <add>, %144, %cst_50 [1] : vector<8x8xf32> to vector<8xf32>
    %146 = vector.shape_cast %145 : vector<8xf32> to vector<8x1xf32>
    %147 = tpu.reciprocal %146 : vector<8x1xf32> -> vector<8x1xf32>
    %148 = vector.broadcast %147 : vector<8x1xf32> to vector<8x8xf32>
    %149 = arith.mulf %144, %148 : vector<8x8xf32>
    %cst_51 = arith.constant dense<0.000000e+00> : vector<8x8xf32>
    %150 = tpu.matmul %149, %135, %cst_51 {dimension_numbers = #tpu.dot_dimension_numbers<[1], [0], [0], [1], [0, 0, 1, 1], [], []>} : vector<8x8xf32>, vector<8x8xf32>, vector<8x8xf32> -> vector<8x8xf32>
    %c8_52 = arith.constant 8 : index
    %c16_53 = arith.constant 16 : index
    %151 = vector.load %arg11[%c8_52, %c16_53] : memref<16x32xf32, #tpu.memory_space<vmem>>, vector<8x8xf32>
    tpu.vector_store %arg11[%c8_52, %c16_53], %150 {strides = array<i32>} : memref<16x32xf32, #tpu.memory_space<vmem>>, vector<8x8xf32>,
    %152 = vector.extract_strided_slice %18 {offsets = [8, 24], sizes = [8, 8], strides = [1, 1]} : vector<16x96xf32> to vector<8x8xf32>
    %153 = vector.extract_strided_slice %18 {offsets = [8, 56], sizes = [8, 8], strides = [1, 1]} : vector<16x96xf32> to vector<8x8xf32>
    %154 = vector.extract_strided_slice %18 {offsets = [8, 88], sizes = [8, 8], strides = [1, 1]} : vector<16x96xf32> to vector<8x8xf32>
    %155 = tpu.transpose %153, [1, 0] : vector<8x8xf32> -> vector<8x8xf32>
    %cst_54 = arith.constant dense<0.000000e+00> : vector<8x8xf32>
    %156 = tpu.matmul %152, %155, %cst_54 {dimension_numbers = #tpu.dot_dimension_numbers<[1], [0], [0], [1], [0, 0, 1, 1], [], []>} : vector<8x8xf32>, vector<8x8xf32>, vector<8x8xf32> -> vector<8x8xf32>
    %cst_55 = arith.constant 0.353553385 : f32
    %157 = vector.broadcast %cst_55 : f32 to vector<8x8xf32>
    %158 = arith.mulf %156, %157 : vector<8x8xf32>
    %cst_56 = arith.constant dense<0xFF800000> : vector<8xf32>
    %159 = vector.multi_reduction <maximumf>, %158, %cst_56 [1] : vector<8x8xf32> to vector<8xf32>
    %160 = vector.shape_cast %159 : vector<8xf32> to vector<8x1xf32>
    %161 = vector.broadcast %160 : vector<8x1xf32> to vector<8x8xf32>
    %162 = arith.subf %158, %161 : vector<8x8xf32>
    %163 = math.exp %162 : vector<8x8xf32>
    %cst_57 = arith.constant dense<0.000000e+00> : vector<8xf32>
    %164 = vector.multi_reduction <add>, %163, %cst_57 [1] : vector<8x8xf32> to vector<8xf32>
    %165 = vector.shape_cast %164 : vector<8xf32> to vector<8x1xf32>
    %166 = tpu.reciprocal %165 : vector<8x1xf32> -> vector<8x1xf32>
    %167 = vector.broadcast %166 : vector<8x1xf32> to vector<8x8xf32>
    %168 = arith.mulf %163, %167 : vector<8x8xf32>
    %cst_58 = arith.constant dense<0.000000e+00> : vector<8x8xf32>
    %169 = tpu.matmul %168, %154, %cst_58 {dimension_numbers = #tpu.dot_dimension_numbers<[1], [0], [0], [1], [0, 0, 1, 1], [], []>} : vector<8x8xf32>, vector<8x8xf32>, vector<8x8xf32> -> vector<8x8xf32>
    %c8_59 = arith.constant 8 : index
    %c24_60 = arith.constant 24 : index
    %170 = vector.load %arg11[%c8_59, %c24_60] : memref<16x32xf32, #tpu.memory_space<vmem>>, vector<8x8xf32>
    tpu.vector_store %arg11[%c8_59, %c24_60], %169 {strides = array<i32>} : memref<16x32xf32, #tpu.memory_space<vmem>>, vector<8x8xf32>,
    %c0_61 = arith.constant 0 : index
    %c0_62 = arith.constant 0 : index
    %171 = vector.load %arg11[%c0_61, %c0_62] : memref<16x32xf32, #tpu.memory_space<vmem>>, vector<16x32xf32>
    %c0_63 = arith.constant 0 : index
    %c0_64 = arith.constant 0 : index
    %c0_65 = arith.constant 0 : index
    %172 = vector.load %arg6[%c0_63, %c0_64, %c0_65] : memref<1x32x32xf32, #tpu.memory_space<vmem>>, vector<1x32x32xf32>
    %173 = vector.shape_cast %172 : vector<1x32x32xf32> to vector<32x32xf32>
    %cst_66 = arith.constant dense<0.000000e+00> : vector<16x32xf32>
    %174 = tpu.matmul %171, %173, %cst_66 {dimension_numbers = #tpu.dot_dimension_numbers<[1], [0], [0], [1], [0, 0, 1, 1], [], []>} : vector<16x32xf32>, vector<32x32xf32>, vector<16x32xf32> -> vector<16x32xf32>
    %175 = vector.broadcast %7 : vector<1x32xf32> to vector<16x32xf32>
    %176 = arith.addf %174, %175 : vector<16x32xf32>
    %177 = arith.addf %176, %3 : vector<16x32xf32>
    %cst_67 = arith.constant dense<0.000000e+00> : vector<16xf32>
    %178 = vector.multi_reduction <add>, %177, %cst_67 [1] : vector<16x32xf32> to vector<16xf32>
    %179 = vector.shape_cast %178 : vector<16xf32> to vector<16x1xf32>
    %cst_68 = arith.constant 3.200000e+01 : f32
    %180 = vector.broadcast %cst_68 : f32 to vector<16x1xf32>
    %181 = arith.divf %179, %180 : vector<16x1xf32>
    %182 = vector.broadcast %181 : vector<16x1xf32> to vector<16x32xf32>
    %183 = arith.subf %177, %182 : vector<16x32xf32>
    %184 = arith.mulf %183, %183 : vector<16x32xf32>
    %cst_69 = arith.constant dense<0.000000e+00> : vector<16xf32>
    %185 = vector.multi_reduction <add>, %184, %cst_69 [1] : vector<16x32xf32> to vector<16xf32>
    %186 = vector.shape_cast %185 : vector<16xf32> to vector<16x1xf32>
    %cst_70 = arith.constant 3.200000e+01 : f32
    %187 = vector.broadcast %cst_70 : f32 to vector<16x1xf32>
    %188 = arith.divf %186, %187 : vector<16x1xf32>
    %189 = vector.broadcast %181 : vector<16x1xf32> to vector<16x32xf32>
    %190 = arith.subf %177, %189 : vector<16x32xf32>
    %cst_71 = arith.constant 9.99999974E-6 : f32
    %191 = vector.broadcast %cst_71 : f32 to vector<16x1xf32>
    %192 = arith.addf %188, %191 : vector<16x1xf32>
    %193 = math.rsqrt %192 : vector<16x1xf32>
    %194 = vector.broadcast %193 : vector<16x1xf32> to vector<16x32xf32>
    %195 = arith.mulf %190, %194 : vector<16x32xf32>
    %196 = vector.broadcast %10 : vector<1x32xf32> to vector<16x32xf32>
    %197 = arith.mulf %195, %196 : vector<16x32xf32>
    %198 = vector.broadcast %11 : vector<1x32xf32> to vector<16x32xf32>
    %199 = arith.addf %197, %198 : vector<16x32xf32>
    %c0_72 = arith.constant 0 : index
    %c0_73 = arith.constant 0 : index
    %c0_74 = arith.constant 0 : index
    %200 = vector.load %arg7[%c0_72, %c0_73, %c0_74] : memref<1x32x128xf32, #tpu.memory_space<vmem>>, vector<1x32x128xf32>
    %201 = vector.shape_cast %200 : vector<1x32x128xf32> to vector<32x128xf32>
    %cst_75 = arith.constant dense<0.000000e+00> : vector<16x128xf32>
    %202 = tpu.matmul %199, %201, %cst_75 {dimension_numbers = #tpu.dot_dimension_numbers<[1], [0], [0], [1], [0, 0, 1, 1], [], []>} : vector<16x32xf32>, vector<32x128xf32>, vector<16x128xf32> -> vector<16x128xf32>
    %203 = vector.broadcast %8 : vector<1x128xf32> to vector<16x128xf32>
    %204 = arith.addf %202, %203 : vector<16x128xf32>
    %cst_76 = arith.constant 0.000000e+00 : f32
    %205 = vector.broadcast %cst_76 : f32 to vector<16x128xf32>
    %206 = arith.maximumf %204, %205 : vector<16x128xf32>
    %c0_77 = arith.constant 0 : index
    %c0_78 = arith.constant 0 : index
    %c0_79 = arith.constant 0 : index
    %207 = vector.load %arg8[%c0_77, %c0_78, %c0_79] : memref<1x128x32xf32, #tpu.memory_space<vmem>>, vector<1x128x32xf32>
    %208 = vector.shape_cast %207 : vector<1x128x32xf32> to vector<128x32xf32>
    %cst_80 = arith.constant dense<0.000000e+00> : vector<16x32xf32>
    %209 = tpu.matmul %206, %208, %cst_80 {dimension_numbers = #tpu.dot_dimension_numbers<[1], [0], [0], [1], [0, 0, 1, 1], [], []>} : vector<16x128xf32>, vector<128x32xf32>, vector<16x32xf32> -> vector<16x32xf32>
    %210 = vector.broadcast %9 : vector<1x32xf32> to vector<16x32xf32>
    %211 = arith.addf %209, %210 : vector<16x32xf32>
    %212 = arith.addf %211, %199 : vector<16x32xf32>
    %cst_81 = arith.constant dense<0.000000e+00> : vector<16xf32>
    %213 = vector.multi_reduction <add>, %212, %cst_81 [1] : vector<16x32xf32> to vector<16xf32>
    %214 = vector.shape_cast %213 : vector<16xf32> to vector<16x1xf32>
    %cst_82 = arith.constant 3.200000e+01 : f32
    %215 = vector.broadcast %cst_82 : f32 to vector<16x1xf32>
    %216 = arith.divf %214, %215 : vector<16x1xf32>
    %217 = vector.broadcast %216 : vector<16x1xf32> to vector<16x32xf32>
    %218 = arith.subf %212, %217 : vector<16x32xf32>
    %219 = arith.mulf %218, %218 : vector<16x32xf32>
    %cst_83 = arith.constant dense<0.000000e+00> : vector<16xf32>
    %220 = vector.multi_reduction <add>, %219, %cst_83 [1] : vector<16x32xf32> to vector<16xf32>
    %221 = vector.shape_cast %220 : vector<16xf32> to vector<16x1xf32>
    %cst_84 = arith.constant 3.200000e+01 : f32
    %222 = vector.broadcast %cst_84 : f32 to vector<16x1xf32>
    %223 = arith.divf %221, %222 : vector<16x1xf32>
    %224 = vector.broadcast %216 : vector<16x1xf32> to vector<16x32xf32>
    %225 = arith.subf %212, %224 : vector<16x32xf32>
    %cst_85 = arith.constant 9.99999974E-6 : f32
    %226 = vector.broadcast %cst_85 : f32 to vector<16x1xf32>
    %227 = arith.addf %223, %226 : vector<16x1xf32>
    %228 = math.rsqrt %227 : vector<16x1xf32>
    %229 = vector.broadcast %228 : vector<16x1xf32> to vector<16x32xf32>
    %230 = arith.mulf %225, %229 : vector<16x32xf32>
    %231 = vector.broadcast %12 : vector<1x32xf32> to vector<16x32xf32>
    %232 = arith.mulf %230, %231 : vector<16x32xf32>
    %233 = vector.broadcast %13 : vector<1x32xf32> to vector<16x32xf32>
    %234 = arith.addf %232, %233 : vector<16x32xf32>
    %c1_i32 = arith.constant 1 : i32
    %235 = arith.cmpi ne, %arg1, %c1_i32 : i32
    %236 = arith.extui %235 : i1 to i32
    %c0_i32_86 = arith.constant 0 : i32
    %237 = arith.cmpi ne, %236, %c0_i32_86 : i32
    scf.if %237 {
      %c0_89 = arith.constant 0 : index
      %c0_90 = arith.constant 0 : index
      %241 = vector.load %arg10[%c0_89, %c0_90] : memref<16x32xf32, #tpu.memory_space<vmem>>, vector<16x32xf32>
      tpu.vector_store %arg10[%c0_89, %c0_90], %234 {strides = array<i32>} : memref<16x32xf32, #tpu.memory_space<vmem>>, vector<16x32xf32>,
    } else {
    }
    %c1_i32_87 = arith.constant 1 : i32
    %238 = arith.cmpi eq, %arg1, %c1_i32_87 : i32
    %239 = arith.extui %238 : i1 to i32
    %c0_i32_88 = arith.constant 0 : i32
    %240 = arith.cmpi ne, %239, %c0_i32_88 : i32
    scf.if %240 {
      %241 = vector.shape_cast %234 : vector<16x32xf32> to vector<2x8x32xf32>
      %c0_89 = arith.constant 0 : index
      %c0_90 = arith.constant 0 : index
      %c0_91 = arith.constant 0 : index
      %242 = vector.load %arg9[%c0_89, %c0_90, %c0_91] : memref<2x8x32xf32, #tpu.memory_space<vmem>>, vector<2x8x32xf32>
      tpu.vector_store %arg9[%c0_89, %c0_90, %c0_91], %241 {strides = array<i32>} : memref<2x8x32xf32, #tpu.memory_space<vmem>>, vector<2x8x32xf32>,
    } else {
    }
    return
  }
  func.func @transform_0(%arg0: i32, %arg1: i32) -> (i32, i32, i32) {
    %c0_i32 = arith.constant 0 : i32
    %c0_i32_0 = arith.constant 0 : i32
    %c0_i32_1 = arith.constant 0 : i32
    return %arg0, %c0_i32, %c0_i32_0 : i32, i32, i32
  }
  func.func @transform_1(%arg0: i32, %arg1: i32) -> (i32, i32) {
    %c0_i32 = arith.constant 0 : i32
    %c0_i32_0 = arith.constant 0 : i32
    %c0_i32_1 = arith.constant 0 : i32
    return %c0_i32, %c0_i32_0 : i32, i32
  }
  func.func @transform_2(%arg0: i32, %arg1: i32) -> (i32, i32, i32) {
    %c0_i32 = arith.constant 0 : i32
    %c0_i32_0 = arith.constant 0 : i32
    %c0_i32_1 = arith.constant 0 : i32
    return %arg1, %c0_i32, %c0_i32_0 : i32, i32, i32
  }
  func.func @transform_3(%arg0: i32, %arg1: i32) -> (i32, i32, i32) {
    %c0_i32 = arith.constant 0 : i32
    %c0_i32_0 = arith.constant 0 : i32
    %c0_i32_1 = arith.constant 0 : i32
    return %arg1, %c0_i32, %c0_i32_0 : i32, i32, i32
  }
  func.func @transform_4(%arg0: i32, %arg1: i32) -> (i32, i32, i32) {
    %c0_i32 = arith.constant 0 : i32
    %c0_i32_0 = arith.constant 0 : i32
    %c0_i32_1 = arith.constant 0 : i32
    return %arg1, %c0_i32, %c0_i32_0 : i32, i32, i32
  }
  func.func @transform_5(%arg0: i32, %arg1: i32) -> (i32, i32, i32) {
    %c0_i32 = arith.constant 0 : i32
    %c0_i32_0 = arith.constant 0 : i32
    %c0_i32_1 = arith.constant 0 : i32
    return %arg1, %c0_i32, %c0_i32_0 : i32, i32, i32
  }
  func.func @transform_6(%arg0: i32, %arg1: i32) -> (i32, i32, i32) {
    %c0_i32 = arith.constant 0 : i32
    %c0_i32_0 = arith.constant 0 : i32
    %c0_i32_1 = arith.constant 0 : i32
    return %arg1, %c0_i32, %c0_i32_0 : i32, i32, i32
  }
  func.func @transform_7(%arg0: i32, %arg1: i32) -> (i32, i32, i32) {
    %c0_i32 = arith.constant 0 : i32
    %c0_i32_0 = arith.constant 0 : i32
    %c0_i32_1 = arith.constant 0 : i32
    return %arg0, %c0_i32, %c0_i32_0 : i32, i32, i32
  }
}

</mosaic_0001>

<llo_original>
// kernel: tpu_custom_call.1
$region0: #{tpu_custom_call.1}
  #allocation0 [shape = 'u32[]', space=smem, size = 0x4, offset = 0x4, fixed_abs, tag = 'smem constant byte address 0x4 - core index']
  #allocation1 [shape = 'u32[144,128]{1,0:T(1,128)}', space=vmem, size = 0x12000, scoped, tag = 'internal scratch']
  #allocation2 [shape = 'f32[16,32]{1,0:T(8,128)}', space=vmem, size = 0x2000, scoped, tag = 'scratch operand']
  #allocation3 [shape = 'f32[16,32]{1,0:T(8,128)}', space=vmem, size = 0x2000, scoped, tag = 'scratch operand']
  %s0 = inlined_call_operand.vmem [shape: f32[2,8,32], index: 0, kind: input, shape index: {}]
  %s1 = inlined_call_operand.vmem [shape: f32[8,32], index: 1, kind: input, shape index: {}]
  %s2 = inlined_call_operand.vmem [shape: f32[2,8,128], index: 2, kind: input, shape index: {}]
  %s3 = inlined_call_operand.vmem [shape: f32[2,32,96], index: 3, kind: input, shape index: {}]
  %s4 = inlined_call_operand.vmem [shape: f32[2,32,32], index: 4, kind: input, shape index: {}]
  %s5 = inlined_call_operand.vmem [shape: f32[2,32,128], index: 5, kind: input, shape index: {}]
  %s6 = inlined_call_operand.vmem [shape: f32[2,128,32], index: 6, kind: input, shape index: {}]
  %s7 = inlined_call_operand.hbm [shape: f32[2,8,32], index: 7, kind: output, shape index: {}]
  %s8 = sld [smem:[#allocation0]]
  $region73: #{tpu_custom_call.1} parent=0
    _
  %s10 = ssub.s32 1, %s8
  %s11 = scalar_select 0, %s10, %s8
  $region1: #{tpu_custom_call.1} parent=0
    #allocation4 [shape = 'u8[8192]{0}', space=vmem, size = 0x2000, scoped, tag = 'output window, operand 0, single buffered']
    #allocation5 [shape = 's32[2]{0}', space=sflag, size = 0x8, scoped, tag = 'scoped memory for tpu_custom_call.1']
    %12 = vsyncpa [#allocation5], 0
    loop: start=0, step=1, limit=4
    $region2: #{tpu_custom_call.1} parent=1 // loop_pre_header
      _
    $region3: #{tpu_custom_call.1} parent=1 // loop_header
      %s14 = sphi 0, %s18
      %p15 = scmp.ge.s32.totalorder %s14, 4
      %s21 = sphi 0, %s33
      %s22 = sphi 0, %s29
      %s23 = sphi 0, %s21
      %s24 = sphi 0, %s22
      %s25 = sphi 0, %s23
      %s26 = sphi 0, %s24
      %s36 = sphi 0, %s38
      %s39 = sphi 0, %s36
      %s40 = sphi 0, %s39
      %s56 = sphi 0, %s40
      %s60 = sphi 0, %s60
      %s62 = sphi 0, %s60
      %s63 = sphi 0, %s62
      %s77 = sphi 0, %s63
      %s83 = sphi 0, %s85
      %s86 = sphi 0, %s83
      %s87 = sphi 0, %s86
      %s103 = sphi 0, %s87
      %s109 = sphi 0, %s111
      %s112 = sphi 0, %s109
      %s113 = sphi 0, %s112
      %s129 = sphi 0, %s113
      %s135 = sphi 0, %s137
      %s138 = sphi 0, %s135
      %s139 = sphi 0, %s138
      %s155 = sphi 0, %s139
      %s161 = sphi 0, %s163
      %s164 = sphi 0, %s161
      %s165 = sphi 0, %s164
      %s181 = sphi 0, %s165
      %s187 = sphi 0, %s189
      %s190 = sphi 0, %s187
      %s191 = sphi 0, %s190
      %s207 = sphi 0, %s191
      %s213 = sphi 0, %s215
      %s216 = sphi 0, %s213
      %s217 = sphi 0, %s216
      %s233 = sphi 0, %s217
    $region4: #{tpu_custom_call.1} parent=1 // loop_header_branch
      %17 = sbr.rel (%p15) target = $region8
    $region5: #{tpu_custom_call.1} parent=1 // loop_body
      %s19 = ssub.s32 %s14, 1
      %s20 = ssub.s32 %s14, 2
      %s27 = sadd.s32 1, %s22
      %p28 = scmp.ge.s32.totalorder %s27, 2
      %s29 = scalar_select %p28, 0, %s27
      %s30 = sadd.s32 1, %s21
      %s31 = scalar_select %p28, %s30, %s21
      %p32 = scmp.ge.s32.totalorder %s31, 1
      %s33 = scalar_select %p32, 0, %s31
      %s34 = ssub.s32 %s21, %s33
      %p35 = scmp.eq.s32.totalorder %s34, 0
      %s37 = sadd.s32 %s36, 1
      %s38 = scalar_select %p35, %s36, %s37
      %p41 = pneg %p35
      %p42 = scmp.eq.s32.totalorder %s14, 1
      %p43 = por %p41, %p42
      %p44 = scmp.ne.s32.totalorder %s36, %s39
      %p45 = scmp.eq.s32.totalorder %s14, 0
      %p46 = por %p44, %p45
      %p47 = scmp.ne.s32.totalorder %s36, %s39
      %p48 = scmp.eq.s32.totalorder %s19, 1
      %p49 = por %p47, %p48
      %p50 = scmp.ne.s32.totalorder %s39, %s40
      %p51 = scmp.eq.s32.totalorder %s19, 0
      %p52 = por %p50, %p51
      %p53 = scmp.ne.s32.totalorder %s39, %s40
      %p54 = scmp.eq.s32.totalorder %s20, 1
      %p55 = por %p53, %p54
      %p57 = scmp.ne.s32.totalorder %s40, %s56
      %p58 = scmp.eq.s32.totalorder %s20, 0
      %p59 = por %p57, %p58
      %s61 = sadd.s32 %s60, 1
      %p64 = scmp.eq.s32.totalorder %s14, 1
      %p65 = scmp.ne.s32.totalorder %s60, %s62
      %p66 = scmp.eq.s32.totalorder %s14, 0
      %p67 = por %p65, %p66
      %p68 = scmp.ne.s32.totalorder %s60, %s62
      %p69 = scmp.eq.s32.totalorder %s19, 1
      %p70 = por %p68, %p69
      %p71 = scmp.ne.s32.totalorder %s62, %s63
      %p72 = scmp.eq.s32.totalorder %s19, 0
      %p73 = por %p71, %p72
      %p74 = scmp.ne.s32.totalorder %s62, %s63
      %p75 = scmp.eq.s32.totalorder %s20, 1
      %p76 = por %p74, %p75
      %p78 = scmp.ne.s32.totalorder %s63, %s77
      %p79 = scmp.eq.s32.totalorder %s20, 0
      %p80 = por %p78, %p79
      %s81 = ssub.s32 %s22, %s29
      %p82 = scmp.eq.s32.totalorder %s81, 0
      %s84 = sadd.s32 %s83, 1
      %s85 = scalar_select %p82, %s83, %s84
      %p88 = pneg %p82
      %p89 = scmp.eq.s32.totalorder %s14, 1
      %p90 = por %p88, %p89
      %p91 = scmp.ne.s32.totalorder %s83, %s86
      %p92 = scmp.eq.s32.totalorder %s14, 0
      %p93 = por %p91, %p92
      %p94 = scmp.ne.s32.totalorder %s83, %s86
      %p95 = scmp.eq.s32.totalorder %s19, 1
      %p96 = por %p94, %p95
      %p97 = scmp.ne.s32.totalorder %s86, %s87
      %p98 = scmp.eq.s32.totalorder %s19, 0
      %p99 = por %p97, %p98
      %p100 = scmp.ne.s32.totalorder %s86, %s87
      %p101 = scmp.eq.s32.totalorder %s20, 1
      %p102 = por %p100, %p101
      %p104 = scmp.ne.s32.totalorder %s87, %s103
      %p105 = scmp.eq.s32.totalorder %s20, 0
      %p106 = por %p104, %p105
      %s107 = ssub.s32 %s22, %s29
      %p108 = scmp.eq.s32.totalorder %s107, 0
      %s110 = sadd.s32 %s109, 1
      %s111 = scalar_select %p108, %s109, %s110
      %p114 = pneg %p108
      %p115 = scmp.eq.s32.totalorder %s14, 1
      %p116 = por %p114, %p115
      %p117 = scmp.ne.s32.totalorder %s109, %s112
      %p118 = scmp.eq.s32.totalorder %s14, 0
      %p119 = por %p117, %p118
      %p120 = scmp.ne.s32.totalorder %s109, %s112
      %p121 = scmp.eq.s32.totalorder %s19, 1
      %p122 = por %p120, %p121
      %p123 = scmp.ne.s32.totalorder %s112, %s113
      %p124 = scmp.eq.s32.totalorder %s19, 0
      %p125 = por %p123, %p124
      %p126 = scmp.ne.s32.totalorder %s112, %s113
      %p127 = scmp.eq.s32.totalorder %s20, 1
      %p128 = por %p126, %p127
      %p130 = scmp.ne.s32.totalorder %s113, %s129
      %p131 = scmp.eq.s32.totalorder %s20, 0
      %p132 = por %p130, %p131
      %s133 = ssub.s32 %s22, %s29
      %p134 = scmp.eq.s32.totalorder %s133, 0
      %s136 = sadd.s32 %s135, 1
      %s137 = scalar_select %p134, %s135, %s136
      %p140 = pneg %p134
      %p141 = scmp.eq.s32.totalorder %s14, 1
      %p142 = por %p140, %p141
      %p143 = scmp.ne.s32.totalorder %s135, %s138
      %p144 = scmp.eq.s32.totalorder %s14, 0
      %p145 = por %p143, %p144
      %p146 = scmp.ne.s32.totalorder %s135, %s138
      %p147 = scmp.eq.s32.totalorder %s19, 1
      %p148 = por %p146, %p147
      %p149 = scmp.ne.s32.totalorder %s138, %s139
      %p150 = scmp.eq.s32.totalorder %s19, 0
      %p151 = por %p149, %p150
      %p152 = scmp.ne.s32.totalorder %s138, %s139
      %p153 = scmp.eq.s32.totalorder %s20, 1
      %p154 = por %p152, %p153
      %p156 = scmp.ne.s32.totalorder %s139, %s155
      %p157 = scmp.eq.s32.totalorder %s20, 0
      %p158 = por %p156, %p157
      %s159 = ssub.s32 %s22, %s29
      %p160 = scmp.eq.s32.totalorder %s159, 0
      %s162 = sadd.s32 %s161, 1
      %s163 = scalar_select %p160, %s161, %s162
      %p166 = pneg %p160
      %p167 = scmp.eq.s32.totalorder %s14, 1
      %p168 = por %p166, %p167
      %p169 = scmp.ne.s32.totalorder %s161, %s164
      %p170 = scmp.eq.s32.totalorder %s14, 0
      %p171 = por %p169, %p170
      %p172 = scmp.ne.s32.totalorder %s161, %s164
      %p173 = scmp.eq.s32.totalorder %s19, 1
      %p174 = por %p172, %p173
      %p175 = scmp.ne.s32.totalorder %s164, %s165
      %p176 = scmp.eq.s32.totalorder %s19, 0
      %p177 = por %p175, %p176
      %p178 = scmp.ne.s32.totalorder %s164, %s165
      %p179 = scmp.eq.s32.totalorder %s20, 1
      %p180 = por %p178, %p179
      %p182 = scmp.ne.s32.totalorder %s165, %s181
      %p183 = scmp.eq.s32.totalorder %s20, 0
      %p184 = por %p182, %p183
      %s185 = ssub.s32 %s22, %s29
      %p186 = scmp.eq.s32.totalorder %s185, 0
      %s188 = sadd.s32 %s187, 1
      %s189 = scalar_select %p186, %s187, %s188
      %p192 = pneg %p186
      %p193 = scmp.eq.s32.totalorder %s14, 1
      %p194 = por %p192, %p193
      %p195 = scmp.ne.s32.totalorder %s187, %s190
      %p196 = scmp.eq.s32.totalorder %s14, 0
      %p197 = por %p195, %p196
      %p198 = scmp.ne.s32.totalorder %s187, %s190
      %p199 = scmp.eq.s32.totalorder %s19, 1
      %p200 = por %p198, %p199
      %p201 = scmp.ne.s32.totalorder %s190, %s191
      %p202 = scmp.eq.s32.totalorder %s19, 0
      %p203 = por %p201, %p202
      %p204 = scmp.ne.s32.totalorder %s190, %s191
      %p205 = scmp.eq.s32.totalorder %s20, 1
      %p206 = por %p204, %p205
      %p208 = scmp.ne.s32.totalorder %s191, %s207
      %p209 = scmp.eq.s32.totalorder %s20, 0
      %p210 = por %p208, %p209
      %s211 = ssub.s32 %s21, %s33
      %p212 = scmp.eq.s32.totalorder %s211, 0
      %s214 = sadd.s32 %s213, 1
      %s215 = scalar_select %p212, %s213, %s214
      %p218 = pneg %p212
      %p219 = scmp.eq.s32.totalorder %s14, 1
      %p220 = por %p218, %p219
      %p221 = scmp.ne.s32.totalorder %s213, %s216
      %p222 = scmp.eq.s32.totalorder %s14, 0
      %p223 = por %p221, %p222
      %p224 = scmp.ne.s32.totalorder %s213, %s216
      %p225 = scmp.eq.s32.totalorder %s19, 1
      %p226 = por %p224, %p225
      %p227 = scmp.ne.s32.totalorder %s216, %s217
      %p228 = scmp.eq.s32.totalorder %s19, 0
      %p229 = por %p227, %p228
      %p230 = scmp.ne.s32.totalorder %s216, %s217
      %p231 = scmp.eq.s32.totalorder %s20, 1
      %p232 = por %p230, %p231
      %p234 = scmp.ne.s32.totalorder %s217, %s233
      %p235 = scmp.eq.s32.totalorder %s20, 0
      %p236 = por %p234, %p235
      %p237 = scmp.le.s32.totalorder 1, %s14
      %p238 = scmp.lt.s32.totalorder %s14, 3
      %p239 = pnand %p237, %p238
      %p240 = pneg %p239
      // Predicated region
      $region9: #{tpu_custom_call.1} parent=5 // pred_check
        _
      $region10: #{tpu_custom_call.1} parent=5 // pred_check_branch
        %242 = sbr.rel (%p239) target = $region12
      $region11: #{tpu_custom_call.1} parent=5 // pred_region
        %s243 = ssub.s32 %s14, 1
        // Predicated region
        $region13: #{tpu_custom_call.1} parent=11 // pred_check
          %p244 = pneg %p52
        $region14: #{tpu_custom_call.1} parent=11 // pred_check_branch
          %246 = sbr.rel (%p244) target = $region16
        $region15: #{tpu_custom_call.1} parent=11 // pred_region
          %s247 = smul.u32 2, %s23
          %p248 = scmp.lt.s32.totalorder %s247, 1
          %s249 = scalar_select %p248, %s247, 1
          %s250 = smul.addr %s249, 8
          %s251 = scalar_lea.vmem %s0, %s250
          %s252 = smul.u32 2, %s23
        $region16: #{tpu_custom_call.1} parent=11 // pred_fallthru
          _
        // Predicated region
        $region17: #{tpu_custom_call.1} parent=11 // pred_check
          %p253 = pneg %p73
        $region18: #{tpu_custom_call.1} parent=11 // pred_check_branch
          %255 = sbr.rel (%p253) target = $region20
        $region19: #{tpu_custom_call.1} parent=11 // pred_region
          _
        $region20: #{tpu_custom_call.1} parent=11 // pred_fallthru
          _
      $region12: #{tpu_custom_call.1} parent=5 // pred_fallthru
        _
      %p256 = scmp.lt.s32.totalorder %s14, 2
      // Predicated region
      $region21: #{tpu_custom_call.1} parent=5 // pred_check
        %p257 = pneg %p256
      $region22: #{tpu_custom_call.1} parent=5 // pred_check_branch
        %259 = sbr.rel (%p257) target = $region24
      $region23: #{tpu_custom_call.1} parent=5 // pred_region
        // Predicated region
        $region25: #{tpu_custom_call.1} parent=23 // pred_check
          %p260 = pneg %p93
        $region26: #{tpu_custom_call.1} parent=23 // pred_check_branch
          %262 = sbr.rel (%p260) target = $region28
        $region27: #{tpu_custom_call.1} parent=23 // pred_region
          %p263 = scmp.lt.s32.totalorder %s22, 1
          %s264 = scalar_select %p263, %s22, 1
          %s265 = smul.addr %s264, 8
          %s266 = scalar_lea.vmem %s2, %s265
        $region28: #{tpu_custom_call.1} parent=23 // pred_fallthru
          _
        // Predicated region
        $region29: #{tpu_custom_call.1} parent=23 // pred_check
          %p267 = pneg %p119
        $region30: #{tpu_custom_call.1} parent=23 // pred_check_branch
          %269 = sbr.rel (%p267) target = $region32
        $region31: #{tpu_custom_call.1} parent=23 // pred_region
          %p270 = scmp.lt.s32.totalorder %s22, 1
          %s271 = scalar_select %p270, %s22, 1
          %s272 = smul.addr %s271, 4
          %s273 = smul.addr %s272, 8
          %s274 = scalar_lea.vmem %s3, %s273
        $region32: #{tpu_custom_call.1} parent=23 // pred_fallthru
          _
        // Predicated region
        $region33: #{tpu_custom_call.1} parent=23 // pred_check
          %p275 = pneg %p145
        $region34: #{tpu_custom_call.1} parent=23 // pred_check_branch
          %277 = sbr.rel (%p275) target = $region36
        $region35: #{tpu_custom_call.1} parent=23 // pred_region
          %p278 = scmp.lt.s32.totalorder %s22, 1
          %s279 = scalar_select %p278, %s22, 1
          %s280 = smul.addr %s279, 4
          %s281 = smul.addr %s280, 8
          %s282 = scalar_lea.vmem %s4, %s281
        $region36: #{tpu_custom_call.1} parent=23 // pred_fallthru
          _
        // Predicated region
        $region37: #{tpu_custom_call.1} parent=23 // pred_check
          %p283 = pneg %p171
        $region38: #{tpu_custom_call.1} parent=23 // pred_check_branch
          %285 = sbr.rel (%p283) target = $region40
        $region39: #{tpu_custom_call.1} parent=23 // pred_region
          %p286 = scmp.lt.s32.totalorder %s22, 1
          %s287 = scalar_select %p286, %s22, 1
          %s288 = smul.addr %s287, 4
          %s289 = smul.addr %s288, 8
          %s290 = scalar_lea.vmem %s5, %s289
        $region40: #{tpu_custom_call.1} parent=23 // pred_fallthru
          _
        // Predicated region
        $region41: #{tpu_custom_call.1} parent=23 // pred_check
          %p291 = pneg %p197
        $region42: #{tpu_custom_call.1} parent=23 // pred_check_branch
          %293 = sbr.rel (%p291) target = $region44
        $region43: #{tpu_custom_call.1} parent=23 // pred_region
          %p294 = scmp.lt.s32.totalorder %s22, 1
          %s295 = scalar_select %p294, %s22, 1
          %s296 = smul.addr %s295, 16
          %s297 = smul.addr %s296, 8
          %s298 = scalar_lea.vmem %s6, %s297
        $region44: #{tpu_custom_call.1} parent=23 // pred_fallthru
          _
      $region24: #{tpu_custom_call.1} parent=5 // pred_fallthru
        _
      %p299 = scmp.le.s32.totalorder 1, %s14
      %p300 = scmp.lt.s32.totalorder %s14, 3
      %p301 = pnand %p299, %p300
      %p302 = pneg %p301
      // Predicated region
      $region45: #{tpu_custom_call.1} parent=5 // pred_check
        _
      $region46: #{tpu_custom_call.1} parent=5 // pred_check_branch
        %304 = sbr.rel (%p301) target = $region48
      $region47: #{tpu_custom_call.1} parent=5 // pred_region
        %s305 = ssub.s32 %s14, 1
        %s306 = smul.u32 2, %s23
        %p307 = scmp.lt.s32.totalorder %s306, 1
        %s308 = scalar_select %p307, %s306, 1
        %s309 = smul.addr %s308, 8
        %s310 = scalar_lea.vmem %s0, %s309
        %p311 = pneg %p52
        %p312 = pneg %p49
        %p313 = pneg %p73
        %p314 = pneg %p70
        %p315 = scmp.lt.s32.totalorder %s24, 1
        %s316 = scalar_select %p315, %s24, 1
        %s317 = smul.addr %s316, 8
        %s318 = scalar_lea.vmem %s2, %s317
        %p319 = pneg %p99
        %p320 = pneg %p96
        %p321 = scmp.lt.s32.totalorder %s24, 1
        %s322 = scalar_select %p321, %s24, 1
        %s323 = smul.addr %s322, 4
        %s324 = smul.addr %s323, 8
        %s325 = scalar_lea.vmem %s3, %s324
        %p326 = pneg %p125
        %p327 = pneg %p122
        %p328 = scmp.lt.s32.totalorder %s24, 1
        %s329 = scalar_select %p328, %s24, 1
        %s330 = smul.addr %s329, 4
        %s331 = smul.addr %s330, 8
        %s332 = scalar_lea.vmem %s4, %s331
        %p333 = pneg %p151
        %p334 = pneg %p148
        %p335 = scmp.lt.s32.totalorder %s24, 1
        %s336 = scalar_select %p335, %s24, 1
        %s337 = smul.addr %s336, 4
        %s338 = smul.addr %s337, 8
        %s339 = scalar_lea.vmem %s5, %s338
        %p340 = pneg %p177
        %p341 = pneg %p174
        %p342 = scmp.lt.s32.totalorder %s24, 1
        %s343 = scalar_select %p342, %s24, 1
        %s344 = smul.addr %s343, 16
        %s345 = smul.addr %s344, 8
        %s346 = scalar_lea.vmem %s6, %s345
        %p347 = pneg %p203
        %p348 = pneg %p200
        %p349 = pneg %p229
        %p350 = pneg %p226
        %s351 = smul.u32 2, %s23
        %p352 = scmp.lt.s32.totalorder %s351, 1
        %s353 = scalar_select %p352, %s351, 1
        %s354 = smul.addr %s353, 8
        %s355 = scalar_lea.vmem %s0, %s354
        %s356 = smul.u32 2, %s23
        %p357 = scmp.lt.s32.totalorder %s24, 1
        %s358 = scalar_select %p357, %s24, 1
        %s359 = smul.addr %s358, 8
        %s360 = scalar_lea.vmem %s2, %s359
        %p361 = scmp.lt.s32.totalorder %s24, 1
        %s362 = scalar_select %p361, %s24, 1
        %s363 = smul.addr %s362, 4
        %s364 = smul.addr %s363, 8
        %s365 = scalar_lea.vmem %s3, %s364
        %p366 = scmp.lt.s32.totalorder %s24, 1
        %s367 = scalar_select %p366, %s24, 1
        %s368 = smul.addr %s367, 4
        %s369 = smul.addr %s368, 8
        %s370 = scalar_lea.vmem %s4, %s369
        %p371 = scmp.lt.s32.totalorder %s24, 1
        %s372 = scalar_select %p371, %s24, 1
        %s373 = smul.addr %s372, 4
        %s374 = smul.addr %s373, 8
        %s375 = scalar_lea.vmem %s5, %s374
        %p376 = scmp.lt.s32.totalorder %s24, 1
        %s377 = scalar_select %p376, %s24, 1
        %s378 = smul.addr %s377, 16
        %s379 = smul.addr %s378, 8
        %s380 = scalar_lea.vmem %s6, %s379
        %s381 = smul.u32 2, %s23
        %p382 = scmp.eq.s32.totalorder %s24, 0
        // Predicated region
        $region49: #{tpu_custom_call.1} parent=47 // pred_check
          %p383 = pneg %p382
        $region50: #{tpu_custom_call.1} parent=47 // pred_check_branch
          %385 = sbr.rel (%p383) target = $region52
        $region51: #{tpu_custom_call.1} parent=47 // pred_region
          %v386 = vld [vmem:[%s355] sm:$0xff]
          %v387 = vld [vmem:[%s355 + $0x8] sm:$0xff]
          %v388 = vld [vmem:[%s1] sm:$0xff]
          %v389 = vadd.f32 %v386, %v388
          %v390 = vadd.f32 %v387, %v388
          %vm391 = vcmask 261120
          %392 = vst.msk [vmem:[#allocation2] sm:$0xff] %vm391, %v389
          %393 = vst.msk [vmem:[#allocation2 + $0x8] sm:$0xff] %vm391, %v390
        $region52: #{tpu_custom_call.1} parent=47 // pred_fallthru
          _
        %v394 = vld [vmem:[#allocation2] sm:$0xff]
        %v395 = vld [vmem:[#allocation2 + $0x8] sm:$0xff]
        %v396 = vld [vmem:[%s360] sm:$0xff]
        %v397 = vld [vmem:[%s365] sm:$0xff]
        %v398 = vld [vmem:[%s365 + $0x8] sm:$0xff]
        %v399 = vld [vmem:[%s365 + $0x10] sm:$0xff]
        %v400 = vld [vmem:[%s365 + $0x18] sm:$0xff]
        %v401 = vlaneseq
        %v402 = vshrl.u32 %v401, 7
        %v403 = vsub.s32 0, %v402
        %v404 = vrot.slane %v396, %v403
        %vm405 = vcmask 261120
        %v407 = vsel %vm405, %v394, 0
        %v410 = vsel %vm405, %v395, 0
        %412 = vmatprep.subr.mxu0 0.0
        %413 = vmatpush1.msra.mxu0 %v397
        %414 = vmatprep.subr.mxu0 0.0
        %415 = vmatpush1.msra.mxu0 %v398
        %416 = vmatprep.subr.mxu0 0.0
        %417 = vmatpush1.msra.mxu0 %v399
        %418 = vmatprep.subr.mxu0 0.0
        %419 = vmatpush1.msra.mxu0 %v400
        %420 = vmatprep.subr.mxu0 0.0
        %421 = vmatpush1.msra.mxu0 0.0
        %422 = vmatprep.subr.mxu0 0.0
        %423 = vmatpush1.msra.mxu0 0.0
        %424 = vmatprep.subr.mxu0 0.0
        %425 = vmatpush1.msra.mxu0 0.0
        %426 = vmatprep.subr.mxu0 0.0
        %427 = vmatpush1.msra.mxu0 0.0
        %428 = vmatprep.subr.mxu0 0.0
        %429 = vmatpush1.msra.mxu0 0.0
        %430 = vmatprep.subr.mxu0 0.0
        %431 = vmatpush1.msra.mxu0 0.0
        %432 = vmatprep.subr.mxu0 0.0
        %433 = vmatpush1.msra.mxu0 0.0
        %434 = vmatprep.subr.mxu0 0.0
        %435 = vmatpush1.msra.mxu0 0.0
        %436 = vmatprep.subr.mxu0 0.0
        %437 = vmatpush1.msra.mxu0 0.0
        %438 = vmatprep.subr.mxu0 0.0
        %439 = vmatpush1.msra.mxu0 0.0
        %440 = vmatprep.subr.mxu0 0.0
        %441 = vmatpush1.msra.mxu0 0.0
        %442 = vmatprep.subr.mxu0 0.0
        %443 = vmatpush1.msra.mxu0 0.0
        %444 = vmatprep.subr.mxu0 0.0
        %445 = vmatpush1.msra.mxu0 0.0
        %446 = vmatprep.subr.mxu0 0.0
        %447 = vmatpush1.msra.mxu0 0.0
        %448 = vmatprep.subr.mxu0 0.0
        %449 = vmatpush1.msra.mxu0 0.0
        %450 = vmatprep.subr.mxu0 0.0
        %451 = vmatpush1.msra.mxu0 0.0
        %452 = vmatprep.subr.mxu0 0.0
        %453 = vmatpush1.msra.mxu0 0.0
        %454 = vmatprep.subr.mxu0 0.0
        %455 = vmatpush1.msra.mxu0 0.0
        %456 = vmatprep.subr.mxu0 0.0
        %457 = vmatpush1.msra.mxu0 0.0
        %458 = vmatprep.subr.mxu0 0.0
        %459 = vmatpush1.msra.mxu0 0.0
        %460 = vmatprep.subr.mxu0 0.0
        %461 = vmatpush1.msra.mxu0 0.0
        %462 = vmatprep.subr.mxu0 0.0
        %463 = vmatpush1.msra.mxu0 0.0
        %464 = vmatprep.subr.mxu0 0.0
        %465 = vmatpush1.msra.mxu0 0.0
        %466 = vmatprep.subr.mxu0 0.0
        %467 = vmatpush1.msra.mxu0 0.0
        %468 = vmatprep.subr.mxu0 0.0
        %469 = vmatpush1.msra.mxu0 0.0
        %470 = vmatprep.subr.mxu0 0.0
        %471 = vmatpush1.msra.mxu0 0.0
        %472 = vmatprep.subr.mxu0 0.0
        %473 = vmatpush1.msra.mxu0 0.0
        %474 = vmatprep.subr.mxu0 0.0
        %475 = vmatpush1.msra.mxu0 0.0
        %476 = vmatprep.mubr.f32.mxu0 0.0
        %477 = vmatmul.mubr.f32.gmra.mrb[0].mxu0 %v407
        %v478 = vpop.f32.mrb[0].mxu0
        %v479 = vadd.f32 %v404, %v478
        %v480 = vpop.f32.mrb[0].mxu0
        %481 = vmatprep.mubr.f32.mxu0 0.0
        %482 = vmatmul.mubr.f32.gmra.mrb[0].mxu0 %v410
        %v483 = vpop.f32.mrb[0].mxu0
        %v484 = vadd.f32 %v404, %v483
        %v485 = vpop.f32.mrb[0].mxu0
        %486 = vdwg.mxu0
        %488 = vrot.lane.b32.xlu0 %v479, 96
        %v489 = vpop.permute.xlu0 %488
        %vm490 = vcmask 64512
        %v491 = vsel %vm490, %v479, 0
        %v493 = vsel %vm490, %v489, 0
        %495 = vmatprep.subr.mxu0 0.0
        %496 = vmatpush1.xpose.msra.mxu0 %v493
        %497 = vmatprep.subr.mxu0 0.0
        %498 = vmatpush1.xpose.msra.mxu0 0.0
        %499 = vmatprep.subr.mxu0 0.0
        %500 = vmatpush1.xpose.msra.mxu0 0.0
        %501 = vmatprep.subr.mxu0 0.0
        %502 = vmatpush1.xpose.msra.mxu0 0.0
        %503 = vmatprep.subr.mxu0 0.0
        %504 = vmatpush1.xpose.msra.mxu0 0.0
        %505 = vmatprep.subr.mxu0 0.0
        %506 = vmatpush1.xpose.msra.mxu0 0.0
        %507 = vmatprep.subr.mxu0 0.0
        %508 = vmatpush1.xpose.msra.mxu0 0.0
        %509 = vmatprep.subr.mxu0 0.0
        %510 = vmatpush1.xpose.msra.mxu0 0.0
        %511 = vmatprep.subr.mxu0 0.0
        %512 = vmatpush1.xpose.msra.mxu0 0.0
        %513 = vmatprep.subr.mxu0 0.0
        %514 = vmatpush1.xpose.msra.mxu0 0.0
        %515 = vmatprep.subr.mxu0 0.0
        %516 = vmatpush1.xpose.msra.mxu0 0.0
        %517 = vmatprep.subr.mxu0 0.0
        %518 = vmatpush1.xpose.msra.mxu0 0.0
        %519 = vmatprep.subr.mxu0 0.0
        %520 = vmatpush1.xpose.msra.mxu0 0.0
        %521 = vmatprep.subr.mxu0 0.0
        %522 = vmatpush1.xpose.msra.mxu0 0.0
        %523 = vmatprep.subr.mxu0 0.0
        %524 = vmatpush1.xpose.msra.mxu0 0.0
        %525 = vmatprep.subr.mxu0 0.0
        %526 = vmatpush1.xpose.msra.mxu0 0.0
        %527 = vmatprep.subr.mxu0 0.0
        %528 = vmatpush1.xpose.msra.mxu0 0.0
        %529 = vmatprep.subr.mxu0 0.0
        %530 = vmatpush1.xpose.msra.mxu0 0.0
        %531 = vmatprep.subr.mxu0 0.0
        %532 = vmatpush1.xpose.msra.mxu0 0.0
        %533 = vmatprep.subr.mxu0 0.0
        %534 = vmatpush1.xpose.msra.mxu0 0.0
        %535 = vmatprep.subr.mxu0 0.0
        %536 = vmatpush1.xpose.msra.mxu0 0.0
        %537 = vmatprep.subr.mxu0 0.0
        %538 = vmatpush1.xpose.msra.mxu0 0.0
        %539 = vmatprep.subr.mxu0 0.0
        %540 = vmatpush1.xpose.msra.mxu0 0.0
        %541 = vmatprep.subr.mxu0 0.0
        %542 = vmatpush1.xpose.msra.mxu0 0.0
        %543 = vmatprep.subr.mxu0 0.0
        %544 = vmatpush1.xpose.msra.mxu0 0.0
        %545 = vmatprep.subr.mxu0 0.0
        %546 = vmatpush1.xpose.msra.mxu0 0.0
        %547 = vmatprep.subr.mxu0 0.0
        %548 = vmatpush1.xpose.msra.mxu0 0.0
        %549 = vmatprep.subr.mxu0 0.0
        %550 = vmatpush1.xpose.msra.mxu0 0.0
        %551 = vmatprep.subr.mxu0 0.0
        %552 = vmatpush1.xpose.msra.mxu0 0.0
        %553 = vmatprep.subr.mxu0 0.0
        %554 = vmatpush1.xpose.msra.mxu0 0.0
        %555 = vmatprep.subr.mxu0 0.0
        %556 = vmatpush1.xpose.msra.mxu0 0.0
        %557 = vmatprep.subr.mxu0 0.0
        %558 = vmatpush1.xpose.msra.mxu0 0.0
        %559 = vmatprep.mubr.f32.mxu0 0.0
        %560 = vmatmul.mubr.f32.gmra.mrb[0].mxu0 %v491
        %v561 = vpop.f32.mrb[0].mxu0
        %v562 = vadd.f32 0.0, %v561
        %v563 = vpop.f32.mrb[0].mxu0
        %564 = vdwg.mxu0
        %v565 = vmul.f32 %v562, 0.35355338
        %v566 = vsel %vm490, %v565, -inf
        %567 = vmax.xlane.f32.xlu0 %v566
        %v568 = vpop.xlane.xlu0 %567
        %v569 = vsub.f32 %v565, %v568
        %v570 = vmul.f32 %v569, 1.442695
        %v571 = vpow.pop %v570
        %v572 = vsel %vm490, %v571, 0.0
        %573 = vadd.xlane.f32.xlu0 %v572
        %v574 = vpop.xlane.xlu0 %573
        %v575 = vrcp.pop %v574
        %v576 = vmul.f32 %v571, %v575
        %577 = vrot.lane.b32.xlu0 %v479, 64
        %v578 = vpop.permute.xlu0 %577
        %v581 = vsel %vm490, %v576, 0
        %583 = vmatprep.subr.mxu0 0.0
        %584 = vmatpush1.msra.mxu0 %v578
        %585 = vmatprep.subr.mxu0 0.0
        %586 = vmatpush1.msra.mxu0 0.0
        %587 = vmatprep.subr.mxu0 0.0
        %588 = vmatpush1.msra.mxu0 0.0
        %589 = vmatprep.subr.mxu0 0.0
        %590 = vmatpush1.msra.mxu0 0.0
        %591 = vmatprep.subr.mxu0 0.0
        %592 = vmatpush1.msra.mxu0 0.0
        %593 = vmatprep.subr.mxu0 0.0
        %594 = vmatpush1.msra.mxu0 0.0
        %595 = vmatprep.subr.mxu0 0.0
        %596 = vmatpush1.msra.mxu0 0.0
        %597 = vmatprep.subr.mxu0 0.0
        %598 = vmatpush1.msra.mxu0 0.0
        %599 = vmatprep.subr.mxu0 0.0
        %600 = vmatpush1.msra.mxu0 0.0
        %601 = vmatprep.subr.mxu0 0.0
        %602 = vmatpush1.msra.mxu0 0.0
        %603 = vmatprep.subr.mxu0 0.0
        %604 = vmatpush1.msra.mxu0 0.0
        %605 = vmatprep.subr.mxu0 0.0
        %606 = vmatpush1.msra.mxu0 0.0
        %607 = vmatprep.subr.mxu0 0.0
        %608 = vmatpush1.msra.mxu0 0.0
        %609 = vmatprep.subr.mxu0 0.0
        %610 = vmatpush1.msra.mxu0 0.0
        %611 = vmatprep.subr.mxu0 0.0
        %612 = vmatpush1.msra.mxu0 0.0
        %613 = vmatprep.subr.mxu0 0.0
        %614 = vmatpush1.msra.mxu0 0.0
        %615 = vmatprep.subr.mxu0 0.0
        %616 = vmatpush1.msra.mxu0 0.0
        %617 = vmatprep.subr.mxu0 0.0
        %618 = vmatpush1.msra.mxu0 0.0
        %619 = vmatprep.subr.mxu0 0.0
        %620 = vmatpush1.msra.mxu0 0.0
        %621 = vmatprep.subr.mxu0 0.0
        %622 = vmatpush1.msra.mxu0 0.0
        %623 = vmatprep.subr.mxu0 0.0
        %624 = vmatpush1.msra.mxu0 0.0
        %625 = vmatprep.subr.mxu0 0.0
        %626 = vmatpush1.msra.mxu0 0.0
        %627 = vmatprep.subr.mxu0 0.0
        %628 = vmatpush1.msra.mxu0 0.0
        %629 = vmatprep.subr.mxu0 0.0
        %630 = vmatpush1.msra.mxu0 0.0
        %631 = vmatprep.subr.mxu0 0.0
        %632 = vmatpush1.msra.mxu0 0.0
        %633 = vmatprep.subr.mxu0 0.0
        %634 = vmatpush1.msra.mxu0 0.0
        %635 = vmatprep.subr.mxu0 0.0
        %636 = vmatpush1.msra.mxu0 0.0
        %637 = vmatprep.subr.mxu0 0.0
        %638 = vmatpush1.msra.mxu0 0.0
        %639 = vmatprep.subr.mxu0 0.0
        %640 = vmatpush1.msra.mxu0 0.0
        %641 = vmatprep.subr.mxu0 0.0
        %642 = vmatpush1.msra.mxu0 0.0
        %643 = vmatprep.subr.mxu0 0.0
        %644 = vmatpush1.msra.mxu0 0.0
        %645 = vmatprep.subr.mxu0 0.0
        %646 = vmatpush1.msra.mxu0 0.0
        %647 = vmatprep.mubr.f32.mxu0 0.0
        %648 = vmatmul.mubr.f32.gmra.mrb[0].mxu0 %v581
        %v649 = vpop.f32.mrb[0].mxu0
        %v650 = vadd.f32 0.0, %v649
        %v651 = vpop.f32.mrb[0].mxu0
        %652 = vdwg.mxu0
        %653 = vst.msk [vmem:[#allocation3] sm:$0xff] %vm490, %v650
        %654 = vrot.lane.b32.xlu0 %v479, 120
        %v655 = vpop.permute.xlu0 %654
        %656 = vrot.lane.b32.xlu0 %v479, 88
        %v657 = vpop.permute.xlu0 %656
        %v658 = vsel %vm490, %v655, 0
        %v660 = vsel %vm490, %v657, 0
        %662 = vmatprep.subr.mxu0 0.0
        %663 = vmatpush1.xpose.msra.mxu0 %v660
        %664 = vmatprep.subr.mxu0 0.0
        %665 = vmatpush1.xpose.msra.mxu0 0.0
        %666 = vmatprep.subr.mxu0 0.0
        %667 = vmatpush1.xpose.msra.mxu0 0.0
        %668 = vmatprep.subr.mxu0 0.0
        %669 = vmatpush1.xpose.msra.mxu0 0.0
        %670 = vmatprep.subr.mxu0 0.0
        %671 = vmatpush1.xpose.msra.mxu0 0.0
        %672 = vmatprep.subr.mxu0 0.0
        %673 = vmatpush1.xpose.msra.mxu0 0.0
        %674 = vmatprep.subr.mxu0 0.0
        %675 = vmatpush1.xpose.msra.mxu0 0.0
        %676 = vmatprep.subr.mxu0 0.0
        %677 = vmatpush1.xpose.msra.mxu0 0.0
        %678 = vmatprep.subr.mxu0 0.0
        %679 = vmatpush1.xpose.msra.mxu0 0.0
        %680 = vmatprep.subr.mxu0 0.0
        %681 = vmatpush1.xpose.msra.mxu0 0.0
        %682 = vmatprep.subr.mxu0 0.0
        %683 = vmatpush1.xpose.msra.mxu0 0.0
        %684 = vmatprep.subr.mxu0 0.0
        %685 = vmatpush1.xpose.msra.mxu0 0.0
        %686 = vmatprep.subr.mxu0 0.0
        %687 = vmatpush1.xpose.msra.mxu0 0.0
        %688 = vmatprep.subr.mxu0 0.0
        %689 = vmatpush1.xpose.msra.mxu0 0.0
        %690 = vmatprep.subr.mxu0 0.0
        %691 = vmatpush1.xpose.msra.mxu0 0.0
        %692 = vmatprep.subr.mxu0 0.0
        %693 = vmatpush1.xpose.msra.mxu0 0.0
        %694 = vmatprep.subr.mxu0 0.0
        %695 = vmatpush1.xpose.msra.mxu0 0.0
        %696 = vmatprep.subr.mxu0 0.0
        %697 = vmatpush1.xpose.msra.mxu0 0.0
        %698 = vmatprep.subr.mxu0 0.0
        %699 = vmatpush1.xpose.msra.mxu0 0.0
        %700 = vmatprep.subr.mxu0 0.0
        %701 = vmatpush1.xpose.msra.mxu0 0.0
        %702 = vmatprep.subr.mxu0 0.0
        %703 = vmatpush1.xpose.msra.mxu0 0.0
        %704 = vmatprep.subr.mxu0 0.0
        %705 = vmatpush1.xpose.msra.mxu0 0.0
        %706 = vmatprep.subr.mxu0 0.0
        %707 = vmatpush1.xpose.msra.mxu0 0.0
        %708 = vmatprep.subr.mxu0 0.0
        %709 = vmatpush1.xpose.msra.mxu0 0.0
        %710 = vmatprep.subr.mxu0 0.0
        %711 = vmatpush1.xpose.msra.mxu0 0.0
        %712 = vmatprep.subr.mxu0 0.0
        %713 = vmatpush1.xpose.msra.mxu0 0.0
        %714 = vmatprep.subr.mxu0 0.0
        %715 = vmatpush1.xpose.msra.mxu0 0.0
        %716 = vmatprep.subr.mxu0 0.0
        %717 = vmatpush1.xpose.msra.mxu0 0.0
        %718 = vmatprep.subr.mxu0 0.0
        %719 = vmatpush1.xpose.msra.mxu0 0.0
        %720 = vmatprep.subr.mxu0 0.0
        %721 = vmatpush1.xpose.msra.mxu0 0.0
        %722 = vmatprep.subr.mxu0 0.0
        %723 = vmatpush1.xpose.msra.mxu0 0.0
        %724 = vmatprep.subr.mxu0 0.0
        %725 = vmatpush1.xpose.msra.mxu0 0.0
        %726 = vmatprep.mubr.f32.mxu0 0.0
        %727 = vmatmul.mubr.f32.gmra.mrb[0].mxu0 %v658
        %v728 = vpop.f32.mrb[0].mxu0
        %v729 = vadd.f32 0.0, %v728
        %v730 = vpop.f32.mrb[0].mxu0
        %731 = vdwg.mxu0
        %v732 = vmul.f32 %v729, 0.35355338
        %v733 = vsel %vm490, %v732, -inf
        %734 = vmax.xlane.f32.xlu0 %v733
        %v735 = vpop.xlane.xlu0 %734
        %v736 = vsub.f32 %v732, %v735
        %v737 = vmul.f32 %v736, 1.442695
        %v738 = vpow.pop %v737
        %v739 = vsel %vm490, %v738, 0.0
        %740 = vadd.xlane.f32.xlu0 %v739
        %v741 = vpop.xlane.xlu0 %740
        %v742 = vrcp.pop %v741
        %v743 = vmul.f32 %v738, %v742
        %744 = vrot.lane.b32.xlu0 %v479, 56
        %v745 = vpop.permute.xlu0 %744
        %v748 = vsel %vm490, %v743, 0
        %750 = vmatprep.subr.mxu0 0.0
        %751 = vmatpush1.msra.mxu0 %v745
        %752 = vmatprep.subr.mxu0 0.0
        %753 = vmatpush1.msra.mxu0 0.0
        %754 = vmatprep.subr.mxu0 0.0
        %755 = vmatpush1.msra.mxu0 0.0
        %756 = vmatprep.subr.mxu0 0.0
        %757 = vmatpush1.msra.mxu0 0.0
        %758 = vmatprep.subr.mxu0 0.0
        %759 = vmatpush1.msra.mxu0 0.0
        %760 = vmatprep.subr.mxu0 0.0
        %761 = vmatpush1.msra.mxu0 0.0
        %762 = vmatprep.subr.mxu0 0.0
        %763 = vmatpush1.msra.mxu0 0.0
        %764 = vmatprep.subr.mxu0 0.0
        %765 = vmatpush1.msra.mxu0 0.0
        %766 = vmatprep.subr.mxu0 0.0
        %767 = vmatpush1.msra.mxu0 0.0
        %768 = vmatprep.subr.mxu0 0.0
        %769 = vmatpush1.msra.mxu0 0.0
        %770 = vmatprep.subr.mxu0 0.0
        %771 = vmatpush1.msra.mxu0 0.0
        %772 = vmatprep.subr.mxu0 0.0
        %773 = vmatpush1.msra.mxu0 0.0
        %774 = vmatprep.subr.mxu0 0.0
        %775 = vmatpush1.msra.mxu0 0.0
        %776 = vmatprep.subr.mxu0 0.0
        %777 = vmatpush1.msra.mxu0 0.0
        %778 = vmatprep.subr.mxu0 0.0
        %779 = vmatpush1.msra.mxu0 0.0
        %780 = vmatprep.subr.mxu0 0.0
        %781 = vmatpush1.msra.mxu0 0.0
        %782 = vmatprep.subr.mxu0 0.0
        %783 = vmatpush1.msra.mxu0 0.0
        %784 = vmatprep.subr.mxu0 0.0
        %785 = vmatpush1.msra.mxu0 0.0
        %786 = vmatprep.subr.mxu0 0.0
        %787 = vmatpush1.msra.mxu0 0.0
        %788 = vmatprep.subr.mxu0 0.0
        %789 = vmatpush1.msra.mxu0 0.0
        %790 = vmatprep.subr.mxu0 0.0
        %791 = vmatpush1.msra.mxu0 0.0
        %792 = vmatprep.subr.mxu0 0.0
        %793 = vmatpush1.msra.mxu0 0.0
        %794 = vmatprep.subr.mxu0 0.0
        %795 = vmatpush1.msra.mxu0 0.0
        %796 = vmatprep.subr.mxu0 0.0
        %797 = vmatpush1.msra.mxu0 0.0
        %798 = vmatprep.subr.mxu0 0.0
        %799 = vmatpush1.msra.mxu0 0.0
        %800 = vmatprep.subr.mxu0 0.0
        %801 = vmatpush1.msra.mxu0 0.0
        %802 = vmatprep.subr.mxu0 0.0
        %803 = vmatpush1.msra.mxu0 0.0
        %804 = vmatprep.subr.mxu0 0.0
        %805 = vmatpush1.msra.mxu0 0.0
        %806 = vmatprep.subr.mxu0 0.0
        %807 = vmatpush1.msra.mxu0 0.0
        %808 = vmatprep.subr.mxu0 0.0
        %809 = vmatpush1.msra.mxu0 0.0
        %810 = vmatprep.subr.mxu0 0.0
        %811 = vmatpush1.msra.mxu0 0.0
        %812 = vmatprep.subr.mxu0 0.0
        %813 = vmatpush1.msra.mxu0 0.0
        %814 = vmatprep.mubr.f32.mxu0 0.0
        %815 = vmatmul.mubr.f32.gmra.mrb[0].mxu0 %v748
        %v816 = vpop.f32.mrb[0].mxu0
        %v817 = vadd.f32 0.0, %v816
        %v818 = vpop.f32.mrb[0].mxu0
        %819 = vdwg.mxu0
        %821 = vrot.lane.b32.xlu0 %v817, 8
        %v822 = vpop.permute.xlu0 %821
        %vm824 = vcmask 130112
        %825 = vst.msk [vmem:[#allocation3] sm:$0xff] %vm824, %v822
        %826 = vrot.lane.b32.xlu0 %v479, 112
        %v827 = vpop.permute.xlu0 %826
        %828 = vrot.lane.b32.xlu0 %v479, 80
        %v829 = vpop.permute.xlu0 %828
        %v830 = vsel %vm490, %v827, 0
        %v832 = vsel %vm490, %v829, 0
        %834 = vmatprep.subr.mxu0 0.0
        %835 = vmatpush1.xpose.msra.mxu0 %v832
        %836 = vmatprep.subr.mxu0 0.0
        %837 = vmatpush1.xpose.msra.mxu0 0.0
        %838 = vmatprep.subr.mxu0 0.0
        %839 = vmatpush1.xpose.msra.mxu0 0.0
        %840 = vmatprep.subr.mxu0 0.0
        %841 = vmatpush1.xpose.msra.mxu0 0.0
        %842 = vmatprep.subr.mxu0 0.0
        %843 = vmatpush1.xpose.msra.mxu0 0.0
        %844 = vmatprep.subr.mxu0 0.0
        %845 = vmatpush1.xpose.msra.mxu0 0.0
        %846 = vmatprep.subr.mxu0 0.0
        %847 = vmatpush1.xpose.msra.mxu0 0.0
        %848 = vmatprep.subr.mxu0 0.0
        %849 = vmatpush1.xpose.msra.mxu0 0.0
        %850 = vmatprep.subr.mxu0 0.0
        %851 = vmatpush1.xpose.msra.mxu0 0.0
        %852 = vmatprep.subr.mxu0 0.0
        %853 = vmatpush1.xpose.msra.mxu0 0.0
        %854 = vmatprep.subr.mxu0 0.0
        %855 = vmatpush1.xpose.msra.mxu0 0.0
        %856 = vmatprep.subr.mxu0 0.0
        %857 = vmatpush1.xpose.msra.mxu0 0.0
        %858 = vmatprep.subr.mxu0 0.0
        %859 = vmatpush1.xpose.msra.mxu0 0.0
        %860 = vmatprep.subr.mxu0 0.0
        %861 = vmatpush1.xpose.msra.mxu0 0.0
        %862 = vmatprep.subr.mxu0 0.0
        %863 = vmatpush1.xpose.msra.mxu0 0.0
        %864 = vmatprep.subr.mxu0 0.0
        %865 = vmatpush1.xpose.msra.mxu0 0.0
        %866 = vmatprep.subr.mxu0 0.0
        %867 = vmatpush1.xpose.msra.mxu0 0.0
        %868 = vmatprep.subr.mxu0 0.0
        %869 = vmatpush1.xpose.msra.mxu0 0.0
        %870 = vmatprep.subr.mxu0 0.0
        %871 = vmatpush1.xpose.msra.mxu0 0.0
        %872 = vmatprep.subr.mxu0 0.0
        %873 = vmatpush1.xpose.msra.mxu0 0.0
        %874 = vmatprep.subr.mxu0 0.0
        %875 = vmatpush1.xpose.msra.mxu0 0.0
        %876 = vmatprep.subr.mxu0 0.0
        %877 = vmatpush1.xpose.msra.mxu0 0.0
        %878 = vmatprep.subr.mxu0 0.0
        %879 = vmatpush1.xpose.msra.mxu0 0.0
        %880 = vmatprep.subr.mxu0 0.0
        %881 = vmatpush1.xpose.msra.mxu0 0.0
        %882 = vmatprep.subr.mxu0 0.0
        %883 = vmatpush1.xpose.msra.mxu0 0.0
        %884 = vmatprep.subr.mxu0 0.0
        %885 = vmatpush1.xpose.msra.mxu0 0.0
        %886 = vmatprep.subr.mxu0 0.0
        %887 = vmatpush1.xpose.msra.mxu0 0.0
        %888 = vmatprep.subr.mxu0 0.0
        %889 = vmatpush1.xpose.msra.mxu0 0.0
        %890 = vmatprep.subr.mxu0 0.0
        %891 = vmatpush1.xpose.msra.mxu0 0.0
        %892 = vmatprep.subr.mxu0 0.0
        %893 = vmatpush1.xpose.msra.mxu0 0.0
        %894 = vmatprep.subr.mxu0 0.0
        %895 = vmatpush1.xpose.msra.mxu0 0.0
        %896 = vmatprep.subr.mxu0 0.0
        %897 = vmatpush1.xpose.msra.mxu0 0.0
        %898 = vmatprep.mubr.f32.mxu0 0.0
        %899 = vmatmul.mubr.f32.gmra.mrb[0].mxu0 %v830
        %v900 = vpop.f32.mrb[0].mxu0
        %v901 = vadd.f32 0.0, %v900
        %v902 = vpop.f32.mrb[0].mxu0
        %903 = vdwg.mxu0
        %v904 = vmul.f32 %v901, 0.35355338
        %v905 = vsel %vm490, %v904, -inf
        %906 = vmax.xlane.f32.xlu0 %v905
        %v907 = vpop.xlane.xlu0 %906
        %v908 = vsub.f32 %v904, %v907
        %v909 = vmul.f32 %v908, 1.442695
        %v910 = vpow.pop %v909
        %v911 = vsel %vm490, %v910, 0.0
        %912 = vadd.xlane.f32.xlu0 %v911
        %v913 = vpop.xlane.xlu0 %912
        %v914 = vrcp.pop %v913
        %v915 = vmul.f32 %v910, %v914
        %916 = vrot.lane.b32.xlu0 %v479, 48
        %v917 = vpop.permute.xlu0 %916
        %v920 = vsel %vm490, %v915, 0
        %922 = vmatprep.subr.mxu0 0.0
        %923 = vmatpush1.msra.mxu0 %v917
        %924 = vmatprep.subr.mxu0 0.0
        %925 = vmatpush1.msra.mxu0 0.0
        %926 = vmatprep.subr.mxu0 0.0
        %927 = vmatpush1.msra.mxu0 0.0
        %928 = vmatprep.subr.mxu0 0.0
        %929 = vmatpush1.msra.mxu0 0.0
        %930 = vmatprep.subr.mxu0 0.0
        %931 = vmatpush1.msra.mxu0 0.0
        %932 = vmatprep.subr.mxu0 0.0
        %933 = vmatpush1.msra.mxu0 0.0
        %934 = vmatprep.subr.mxu0 0.0
        %935 = vmatpush1.msra.mxu0 0.0
        %936 = vmatprep.subr.mxu0 0.0
        %937 = vmatpush1.msra.mxu0 0.0
        %938 = vmatprep.subr.mxu0 0.0
        %939 = vmatpush1.msra.mxu0 0.0
        %940 = vmatprep.subr.mxu0 0.0
        %941 = vmatpush1.msra.mxu0 0.0
        %942 = vmatprep.subr.mxu0 0.0
        %943 = vmatpush1.msra.mxu0 0.0
        %944 = vmatprep.subr.mxu0 0.0
        %945 = vmatpush1.msra.mxu0 0.0
        %946 = vmatprep.subr.mxu0 0.0
        %947 = vmatpush1.msra.mxu0 0.0
        %948 = vmatprep.subr.mxu0 0.0
        %949 = vmatpush1.msra.mxu0 0.0
        %950 = vmatprep.subr.mxu0 0.0
        %951 = vmatpush1.msra.mxu0 0.0
        %952 = vmatprep.subr.mxu0 0.0
        %953 = vmatpush1.msra.mxu0 0.0
        %954 = vmatprep.subr.mxu0 0.0
        %955 = vmatpush1.msra.mxu0 0.0
        %956 = vmatprep.subr.mxu0 0.0
        %957 = vmatpush1.msra.mxu0 0.0
        %958 = vmatprep.subr.mxu0 0.0
        %959 = vmatpush1.msra.mxu0 0.0
        %960 = vmatprep.subr.mxu0 0.0
        %961 = vmatpush1.msra.mxu0 0.0
        %962 = vmatprep.subr.mxu0 0.0
        %963 = vmatpush1.msra.mxu0 0.0
        %964 = vmatprep.subr.mxu0 0.0
        %965 = vmatpush1.msra.mxu0 0.0
        %966 = vmatprep.subr.mxu0 0.0
        %967 = vmatpush1.msra.mxu0 0.0
        %968 = vmatprep.subr.mxu0 0.0
        %969 = vmatpush1.msra.mxu0 0.0
        %970 = vmatprep.subr.mxu0 0.0
        %971 = vmatpush1.msra.mxu0 0.0
        %972 = vmatprep.subr.mxu0 0.0
        %973 = vmatpush1.msra.mxu0 0.0
        %974 = vmatprep.subr.mxu0 0.0
        %975 = vmatpush1.msra.mxu0 0.0
        %976 = vmatprep.subr.mxu0 0.0
        %977 = vmatpush1.msra.mxu0 0.0
        %978 = vmatprep.subr.mxu0 0.0
        %979 = vmatpush1.msra.mxu0 0.0
        %980 = vmatprep.subr.mxu0 0.0
        %981 = vmatpush1.msra.mxu0 0.0
        %982 = vmatprep.subr.mxu0 0.0
        %983 = vmatpush1.msra.mxu0 0.0
        %984 = vmatprep.subr.mxu0 0.0
        %985 = vmatpush1.msra.mxu0 0.0
        %986 = vmatprep.mubr.f32.mxu0 0.0
        %987 = vmatmul.mubr.f32.gmra.mrb[0].mxu0 %v920
        %v988 = vpop.f32.mrb[0].mxu0
        %v989 = vadd.f32 0.0, %v988
        %v990 = vpop.f32.mrb[0].mxu0
        %991 = vdwg.mxu0
        %993 = vrot.lane.b32.xlu0 %v989, 16
        %v994 = vpop.permute.xlu0 %993
        %vm996 = vcmask 195712
        %997 = vst.msk [vmem:[#allocation3] sm:$0xff] %vm996, %v994
        %998 = vrot.lane.b32.xlu0 %v479, 104
        %v999 = vpop.permute.xlu0 %998
        %1000 = vrot.lane.b32.xlu0 %v479, 72
        %v1001 = vpop.permute.xlu0 %1000
        %v1002 = vsel %vm490, %v999, 0
        %v1004 = vsel %vm490, %v1001, 0
        %1006 = vmatprep.subr.mxu0 0.0
        %1007 = vmatpush1.xpose.msra.mxu0 %v1004
        %1008 = vmatprep.subr.mxu0 0.0
        %1009 = vmatpush1.xpose.msra.mxu0 0.0
        %1010 = vmatprep.subr.mxu0 0.0
        %1011 = vmatpush1.xpose.msra.mxu0 0.0
        %1012 = vmatprep.subr.mxu0 0.0
        %1013 = vmatpush1.xpose.msra.mxu0 0.0
        %1014 = vmatprep.subr.mxu0 0.0
        %1015 = vmatpush1.xpose.msra.mxu0 0.0
        %1016 = vmatprep.subr.mxu0 0.0
        %1017 = vmatpush1.xpose.msra.mxu0 0.0
        %1018 = vmatprep.subr.mxu0 0.0
        %1019 = vmatpush1.xpose.msra.mxu0 0.0
        %1020 = vmatprep.subr.mxu0 0.0
        %1021 = vmatpush1.xpose.msra.mxu0 0.0
        %1022 = vmatprep.subr.mxu0 0.0
        %1023 = vmatpush1.xpose.msra.mxu0 0.0
        %1024 = vmatprep.subr.mxu0 0.0
        %1025 = vmatpush1.xpose.msra.mxu0 0.0
        %1026 = vmatprep.subr.mxu0 0.0
        %1027 = vmatpush1.xpose.msra.mxu0 0.0
        %1028 = vmatprep.subr.mxu0 0.0
        %1029 = vmatpush1.xpose.msra.mxu0 0.0
        %1030 = vmatprep.subr.mxu0 0.0
        %1031 = vmatpush1.xpose.msra.mxu0 0.0
        %1032 = vmatprep.subr.mxu0 0.0
        %1033 = vmatpush1.xpose.msra.mxu0 0.0
        %1034 = vmatprep.subr.mxu0 0.0
        %1035 = vmatpush1.xpose.msra.mxu0 0.0
        %1036 = vmatprep.subr.mxu0 0.0
        %1037 = vmatpush1.xpose.msra.mxu0 0.0
        %1038 = vmatprep.subr.mxu0 0.0
        %1039 = vmatpush1.xpose.msra.mxu0 0.0
        %1040 = vmatprep.subr.mxu0 0.0
        %1041 = vmatpush1.xpose.msra.mxu0 0.0
        %1042 = vmatprep.subr.mxu0 0.0
        %1043 = vmatpush1.xpose.msra.mxu0 0.0
        %1044 = vmatprep.subr.mxu0 0.0
        %1045 = vmatpush1.xpose.msra.mxu0 0.0
        %1046 = vmatprep.subr.mxu0 0.0
        %1047 = vmatpush1.xpose.msra.mxu0 0.0
        %1048 = vmatprep.subr.mxu0 0.0
        %1049 = vmatpush1.xpose.msra.mxu0 0.0
        %1050 = vmatprep.subr.mxu0 0.0
        %1051 = vmatpush1.xpose.msra.mxu0 0.0
        %1052 = vmatprep.subr.mxu0 0.0
        %1053 = vmatpush1.xpose.msra.mxu0 0.0
        %1054 = vmatprep.subr.mxu0 0.0
        %1055 = vmatpush1.xpose.msra.mxu0 0.0
        %1056 = vmatprep.subr.mxu0 0.0
        %1057 = vmatpush1.xpose.msra.mxu0 0.0
        %1058 = vmatprep.subr.mxu0 0.0
        %1059 = vmatpush1.xpose.msra.mxu0 0.0
        %1060 = vmatprep.subr.mxu0 0.0
        %1061 = vmatpush1.xpose.msra.mxu0 0.0
        %1062 = vmatprep.subr.mxu0 0.0
        %1063 = vmatpush1.xpose.msra.mxu0 0.0
        %1064 = vmatprep.subr.mxu0 0.0
        %1065 = vmatpush1.xpose.msra.mxu0 0.0
        %1066 = vmatprep.subr.mxu0 0.0
        %1067 = vmatpush1.xpose.msra.mxu0 0.0
        %1068 = vmatprep.subr.mxu0 0.0
        %1069 = vmatpush1.xpose.msra.mxu0 0.0
        %1070 = vmatprep.mubr.f32.mxu0 0.0
        %1071 = vmatmul.mubr.f32.gmra.mrb[0].mxu0 %v1002
        %v1072 = vpop.f32.mrb[0].mxu0
        %v1073 = vadd.f32 0.0, %v1072
        %v1074 = vpop.f32.mrb[0].mxu0
        %1075 = vdwg.mxu0
        %v1076 = vmul.f32 %v1073, 0.35355338
        %v1077 = vsel %vm490, %v1076, -inf
        %1078 = vmax.xlane.f32.xlu0 %v1077
        %v1079 = vpop.xlane.xlu0 %1078
        %v1080 = vsub.f32 %v1076, %v1079
        %v1081 = vmul.f32 %v1080, 1.442695
        %v1082 = vpow.pop %v1081
        %v1083 = vsel %vm490, %v1082, 0.0
        %1084 = vadd.xlane.f32.xlu0 %v1083
        %v1085 = vpop.xlane.xlu0 %1084
        %v1086 = vrcp.pop %v1085
        %v1087 = vmul.f32 %v1082, %v1086
        %1088 = vrot.lane.b32.xlu0 %v479, 40
        %v1089 = vpop.permute.xlu0 %1088
        %v1092 = vsel %vm490, %v1087, 0
        %1094 = vmatprep.subr.mxu0 0.0
        %1095 = vmatpush1.msra.mxu0 %v1089
        %1096 = vmatprep.subr.mxu0 0.0
        %1097 = vmatpush1.msra.mxu0 0.0
        %1098 = vmatprep.subr.mxu0 0.0
        %1099 = vmatpush1.msra.mxu0 0.0
        %1100 = vmatprep.subr.mxu0 0.0
        %1101 = vmatpush1.msra.mxu0 0.0
        %1102 = vmatprep.subr.mxu0 0.0
        %1103 = vmatpush1.msra.mxu0 0.0
        %1104 = vmatprep.subr.mxu0 0.0
        %1105 = vmatpush1.msra.mxu0 0.0
        %1106 = vmatprep.subr.mxu0 0.0
        %1107 = vmatpush1.msra.mxu0 0.0
        %1108 = vmatprep.subr.mxu0 0.0
        %1109 = vmatpush1.msra.mxu0 0.0
        %1110 = vmatprep.subr.mxu0 0.0
        %1111 = vmatpush1.msra.mxu0 0.0
        %1112 = vmatprep.subr.mxu0 0.0
        %1113 = vmatpush1.msra.mxu0 0.0
        %1114 = vmatprep.subr.mxu0 0.0
        %1115 = vmatpush1.msra.mxu0 0.0
        %1116 = vmatprep.subr.mxu0 0.0
        %1117 = vmatpush1.msra.mxu0 0.0
        %1118 = vmatprep.subr.mxu0 0.0
        %1119 = vmatpush1.msra.mxu0 0.0
        %1120 = vmatprep.subr.mxu0 0.0
        %1121 = vmatpush1.msra.mxu0 0.0
        %1122 = vmatprep.subr.mxu0 0.0
        %1123 = vmatpush1.msra.mxu0 0.0
        %1124 = vmatprep.subr.mxu0 0.0
        %1125 = vmatpush1.msra.mxu0 0.0
        %1126 = vmatprep.subr.mxu0 0.0
        %1127 = vmatpush1.msra.mxu0 0.0
        %1128 = vmatprep.subr.mxu0 0.0
        %1129 = vmatpush1.msra.mxu0 0.0
        %1130 = vmatprep.subr.mxu0 0.0
        %1131 = vmatpush1.msra.mxu0 0.0
        %1132 = vmatprep.subr.mxu0 0.0
        %1133 = vmatpush1.msra.mxu0 0.0
        %1134 = vmatprep.subr.mxu0 0.0
        %1135 = vmatpush1.msra.mxu0 0.0
        %1136 = vmatprep.subr.mxu0 0.0
        %1137 = vmatpush1.msra.mxu0 0.0
        %1138 = vmatprep.subr.mxu0 0.0
        %1139 = vmatpush1.msra.mxu0 0.0
        %1140 = vmatprep.subr.mxu0 0.0
        %1141 = vmatpush1.msra.mxu0 0.0
        %1142 = vmatprep.subr.mxu0 0.0
        %1143 = vmatpush1.msra.mxu0 0.0
        %1144 = vmatprep.subr.mxu0 0.0
        %1145 = vmatpush1.msra.mxu0 0.0
        %1146 = vmatprep.subr.mxu0 0.0
        %1147 = vmatpush1.msra.mxu0 0.0
        %1148 = vmatprep.subr.mxu0 0.0
        %1149 = vmatpush1.msra.mxu0 0.0
        %1150 = vmatprep.subr.mxu0 0.0
        %1151 = vmatpush1.msra.mxu0 0.0
        %1152 = vmatprep.subr.mxu0 0.0
        %1153 = vmatpush1.msra.mxu0 0.0
        %1154 = vmatprep.subr.mxu0 0.0
        %1155 = vmatpush1.msra.mxu0 0.0
        %1156 = vmatprep.subr.mxu0 0.0
        %1157 = vmatpush1.msra.mxu0 0.0
        %1158 = vmatprep.mubr.f32.mxu0 0.0
        %1159 = vmatmul.mubr.f32.gmra.mrb[0].mxu0 %v1092
        %v1160 = vpop.f32.mrb[0].mxu0
        %v1161 = vadd.f32 0.0, %v1160
        %v1162 = vpop.f32.mrb[0].mxu0
        %1163 = vdwg.mxu0
        %1165 = vrot.lane.b32.xlu0 %v1161, 24
        %v1166 = vpop.permute.xlu0 %1165
        %vm1168 = vcmask 261312
        %1169 = vst.msk [vmem:[#allocation3] sm:$0xff] %vm1168, %v1166
        %1171 = vrot.lane.b32.xlu0 %v484, 96
        %v1172 = vpop.permute.xlu0 %1171
        %v1173 = vsel %vm490, %v484, 0
        %v1175 = vsel %vm490, %v1172, 0
        %1177 = vmatprep.subr.mxu0 0.0
        %1178 = vmatpush1.xpose.msra.mxu0 %v1175
        %1179 = vmatprep.subr.mxu0 0.0
        %1180 = vmatpush1.xpose.msra.mxu0 0.0
        %1181 = vmatprep.subr.mxu0 0.0
        %1182 = vmatpush1.xpose.msra.mxu0 0.0
        %1183 = vmatprep.subr.mxu0 0.0
        %1184 = vmatpush1.xpose.msra.mxu0 0.0
        %1185 = vmatprep.subr.mxu0 0.0
        %1186 = vmatpush1.xpose.msra.mxu0 0.0
        %1187 = vmatprep.subr.mxu0 0.0
        %1188 = vmatpush1.xpose.msra.mxu0 0.0
        %1189 = vmatprep.subr.mxu0 0.0
        %1190 = vmatpush1.xpose.msra.mxu0 0.0
        %1191 = vmatprep.subr.mxu0 0.0
        %1192 = vmatpush1.xpose.msra.mxu0 0.0
        %1193 = vmatprep.subr.mxu0 0.0
        %1194 = vmatpush1.xpose.msra.mxu0 0.0
        %1195 = vmatprep.subr.mxu0 0.0
        %1196 = vmatpush1.xpose.msra.mxu0 0.0
        %1197 = vmatprep.subr.mxu0 0.0
        %1198 = vmatpush1.xpose.msra.mxu0 0.0
        %1199 = vmatprep.subr.mxu0 0.0
        %1200 = vmatpush1.xpose.msra.mxu0 0.0
        %1201 = vmatprep.subr.mxu0 0.0
        %1202 = vmatpush1.xpose.msra.mxu0 0.0
        %1203 = vmatprep.subr.mxu0 0.0
        %1204 = vmatpush1.xpose.msra.mxu0 0.0
        %1205 = vmatprep.subr.mxu0 0.0
        %1206 = vmatpush1.xpose.msra.mxu0 0.0
        %1207 = vmatprep.subr.mxu0 0.0
        %1208 = vmatpush1.xpose.msra.mxu0 0.0
        %1209 = vmatprep.subr.mxu0 0.0
        %1210 = vmatpush1.xpose.msra.mxu0 0.0
        %1211 = vmatprep.subr.mxu0 0.0
        %1212 = vmatpush1.xpose.msra.mxu0 0.0
        %1213 = vmatprep.subr.mxu0 0.0
        %1214 = vmatpush1.xpose.msra.mxu0 0.0
        %1215 = vmatprep.subr.mxu0 0.0
        %1216 = vmatpush1.xpose.msra.mxu0 0.0
        %1217 = vmatprep.subr.mxu0 0.0
        %1218 = vmatpush1.xpose.msra.mxu0 0.0
        %1219 = vmatprep.subr.mxu0 0.0
        %1220 = vmatpush1.xpose.msra.mxu0 0.0
        %1221 = vmatprep.subr.mxu0 0.0
        %1222 = vmatpush1.xpose.msra.mxu0 0.0
        %1223 = vmatprep.subr.mxu0 0.0
        %1224 = vmatpush1.xpose.msra.mxu0 0.0
        %1225 = vmatprep.subr.mxu0 0.0
        %1226 = vmatpush1.xpose.msra.mxu0 0.0
        %1227 = vmatprep.subr.mxu0 0.0
        %1228 = vmatpush1.xpose.msra.mxu0 0.0
        %1229 = vmatprep.subr.mxu0 0.0
        %1230 = vmatpush1.xpose.msra.mxu0 0.0
        %1231 = vmatprep.subr.mxu0 0.0
        %1232 = vmatpush1.xpose.msra.mxu0 0.0
        %1233 = vmatprep.subr.mxu0 0.0
        %1234 = vmatpush1.xpose.msra.mxu0 0.0
        %1235 = vmatprep.subr.mxu0 0.0
        %1236 = vmatpush1.xpose.msra.mxu0 0.0
        %1237 = vmatprep.subr.mxu0 0.0
        %1238 = vmatpush1.xpose.msra.mxu0 0.0
        %1239 = vmatprep.subr.mxu0 0.0
        %1240 = vmatpush1.xpose.msra.mxu0 0.0
        %1241 = vmatprep.mubr.f32.mxu0 0.0
        %1242 = vmatmul.mubr.f32.gmra.mrb[0].mxu0 %v1173
        %v1243 = vpop.f32.mrb[0].mxu0
        %v1244 = vadd.f32 0.0, %v1243
        %v1245 = vpop.f32.mrb[0].mxu0
        %1246 = vdwg.mxu0
        %v1247 = vmul.f32 %v1244, 0.35355338
        %v1248 = vsel %vm490, %v1247, -inf
        %1249 = vmax.xlane.f32.xlu0 %v1248
        %v1250 = vpop.xlane.xlu0 %1249
        %v1251 = vsub.f32 %v1247, %v1250
        %v1252 = vmul.f32 %v1251, 1.442695
        %v1253 = vpow.pop %v1252
        %v1254 = vsel %vm490, %v1253, 0.0
        %1255 = vadd.xlane.f32.xlu0 %v1254
        %v1256 = vpop.xlane.xlu0 %1255
        %v1257 = vrcp.pop %v1256
        %v1258 = vmul.f32 %v1253, %v1257
        %1259 = vrot.lane.b32.xlu0 %v484, 64
        %v1260 = vpop.permute.xlu0 %1259
        %v1263 = vsel %vm490, %v1258, 0
        %1265 = vmatprep.subr.mxu0 0.0
        %1266 = vmatpush1.msra.mxu0 %v1260
        %1267 = vmatprep.subr.mxu0 0.0
        %1268 = vmatpush1.msra.mxu0 0.0
        %1269 = vmatprep.subr.mxu0 0.0
        %1270 = vmatpush1.msra.mxu0 0.0
        %1271 = vmatprep.subr.mxu0 0.0
        %1272 = vmatpush1.msra.mxu0 0.0
        %1273 = vmatprep.subr.mxu0 0.0
        %1274 = vmatpush1.msra.mxu0 0.0
        %1275 = vmatprep.subr.mxu0 0.0
        %1276 = vmatpush1.msra.mxu0 0.0
        %1277 = vmatprep.subr.mxu0 0.0
        %1278 = vmatpush1.msra.mxu0 0.0
        %1279 = vmatprep.subr.mxu0 0.0
        %1280 = vmatpush1.msra.mxu0 0.0
        %1281 = vmatprep.subr.mxu0 0.0
        %1282 = vmatpush1.msra.mxu0 0.0
        %1283 = vmatprep.subr.mxu0 0.0
        %1284 = vmatpush1.msra.mxu0 0.0
        %1285 = vmatprep.subr.mxu0 0.0
        %1286 = vmatpush1.msra.mxu0 0.0
        %1287 = vmatprep.subr.mxu0 0.0
        %1288 = vmatpush1.msra.mxu0 0.0
        %1289 = vmatprep.subr.mxu0 0.0
        %1290 = vmatpush1.msra.mxu0 0.0
        %1291 = vmatprep.subr.mxu0 0.0
        %1292 = vmatpush1.msra.mxu0 0.0
        %1293 = vmatprep.subr.mxu0 0.0
        %1294 = vmatpush1.msra.mxu0 0.0
        %1295 = vmatprep.subr.mxu0 0.0
        %1296 = vmatpush1.msra.mxu0 0.0
        %1297 = vmatprep.subr.mxu0 0.0
        %1298 = vmatpush1.msra.mxu0 0.0
        %1299 = vmatprep.subr.mxu0 0.0
        %1300 = vmatpush1.msra.mxu0 0.0
        %1301 = vmatprep.subr.mxu0 0.0
        %1302 = vmatpush1.msra.mxu0 0.0
        %1303 = vmatprep.subr.mxu0 0.0
        %1304 = vmatpush1.msra.mxu0 0.0
        %1305 = vmatprep.subr.mxu0 0.0
        %1306 = vmatpush1.msra.mxu0 0.0
        %1307 = vmatprep.subr.mxu0 0.0
        %1308 = vmatpush1.msra.mxu0 0.0
        %1309 = vmatprep.subr.mxu0 0.0
        %1310 = vmatpush1.msra.mxu0 0.0
        %1311 = vmatprep.subr.mxu0 0.0
        %1312 = vmatpush1.msra.mxu0 0.0
        %1313 = vmatprep.subr.mxu0 0.0
        %1314 = vmatpush1.msra.mxu0 0.0
        %1315 = vmatprep.subr.mxu0 0.0
        %1316 = vmatpush1.msra.mxu0 0.0
        %1317 = vmatprep.subr.mxu0 0.0
        %1318 = vmatpush1.msra.mxu0 0.0
        %1319 = vmatprep.subr.mxu0 0.0
        %1320 = vmatpush1.msra.mxu0 0.0
        %1321 = vmatprep.subr.mxu0 0.0
        %1322 = vmatpush1.msra.mxu0 0.0
        %1323 = vmatprep.subr.mxu0 0.0
        %1324 = vmatpush1.msra.mxu0 0.0
        %1325 = vmatprep.subr.mxu0 0.0
        %1326 = vmatpush1.msra.mxu0 0.0
        %1327 = vmatprep.subr.mxu0 0.0
        %1328 = vmatpush1.msra.mxu0 0.0
        %1329 = vmatprep.mubr.f32.mxu0 0.0
        %1330 = vmatmul.mubr.f32.gmra.mrb[0].mxu0 %v1263
        %v1331 = vpop.f32.mrb[0].mxu0
        %v1332 = vadd.f32 0.0, %v1331
        %v1333 = vpop.f32.mrb[0].mxu0
        %1334 = vdwg.mxu0
        %1335 = vst.msk [vmem:[#allocation3 + $0x8] sm:$0xff] %vm490, %v1332
        %1336 = vrot.lane.b32.xlu0 %v484, 120
        %v1337 = vpop.permute.xlu0 %1336
        %1338 = vrot.lane.b32.xlu0 %v484, 88
        %v1339 = vpop.permute.xlu0 %1338
        %v1340 = vsel %vm490, %v1337, 0
        %v1342 = vsel %vm490, %v1339, 0
        %1344 = vmatprep.subr.mxu0 0.0
        %1345 = vmatpush1.xpose.msra.mxu0 %v1342
        %1346 = vmatprep.subr.mxu0 0.0
        %1347 = vmatpush1.xpose.msra.mxu0 0.0
        %1348 = vmatprep.subr.mxu0 0.0
        %1349 = vmatpush1.xpose.msra.mxu0 0.0
        %1350 = vmatprep.subr.mxu0 0.0
        %1351 = vmatpush1.xpose.msra.mxu0 0.0
        %1352 = vmatprep.subr.mxu0 0.0
        %1353 = vmatpush1.xpose.msra.mxu0 0.0
        %1354 = vmatprep.subr.mxu0 0.0
        %1355 = vmatpush1.xpose.msra.mxu0 0.0
        %1356 = vmatprep.subr.mxu0 0.0
        %1357 = vmatpush1.xpose.msra.mxu0 0.0
        %1358 = vmatprep.subr.mxu0 0.0
        %1359 = vmatpush1.xpose.msra.mxu0 0.0
        %1360 = vmatprep.subr.mxu0 0.0
        %1361 = vmatpush1.xpose.msra.mxu0 0.0
        %1362 = vmatprep.subr.mxu0 0.0
        %1363 = vmatpush1.xpose.msra.mxu0 0.0
        %1364 = vmatprep.subr.mxu0 0.0
        %1365 = vmatpush1.xpose.msra.mxu0 0.0
        %1366 = vmatprep.subr.mxu0 0.0
        %1367 = vmatpush1.xpose.msra.mxu0 0.0
        %1368 = vmatprep.subr.mxu0 0.0
        %1369 = vmatpush1.xpose.msra.mxu0 0.0
        %1370 = vmatprep.subr.mxu0 0.0
        %1371 = vmatpush1.xpose.msra.mxu0 0.0
        %1372 = vmatprep.subr.mxu0 0.0
        %1373 = vmatpush1.xpose.msra.mxu0 0.0
        %1374 = vmatprep.subr.mxu0 0.0
        %1375 = vmatpush1.xpose.msra.mxu0 0.0
        %1376 = vmatprep.subr.mxu0 0.0
        %1377 = vmatpush1.xpose.msra.mxu0 0.0
        %1378 = vmatprep.subr.mxu0 0.0
        %1379 = vmatpush1.xpose.msra.mxu0 0.0
        %1380 = vmatprep.subr.mxu0 0.0
        %1381 = vmatpush1.xpose.msra.mxu0 0.0
        %1382 = vmatprep.subr.mxu0 0.0
        %1383 = vmatpush1.xpose.msra.mxu0 0.0
        %1384 = vmatprep.subr.mxu0 0.0
        %1385 = vmatpush1.xpose.msra.mxu0 0.0
        %1386 = vmatprep.subr.mxu0 0.0
        %1387 = vmatpush1.xpose.msra.mxu0 0.0
        %1388 = vmatprep.subr.mxu0 0.0
        %1389 = vmatpush1.xpose.msra.mxu0 0.0
        %1390 = vmatprep.subr.mxu0 0.0
        %1391 = vmatpush1.xpose.msra.mxu0 0.0
        %1392 = vmatprep.subr.mxu0 0.0
        %1393 = vmatpush1.xpose.msra.mxu0 0.0
        %1394 = vmatprep.subr.mxu0 0.0
        %1395 = vmatpush1.xpose.msra.mxu0 0.0
        %1396 = vmatprep.subr.mxu0 0.0
        %1397 = vmatpush1.xpose.msra.mxu0 0.0
        %1398 = vmatprep.subr.mxu0 0.0
        %1399 = vmatpush1.xpose.msra.mxu0 0.0
        %1400 = vmatprep.subr.mxu0 0.0
        %1401 = vmatpush1.xpose.msra.mxu0 0.0
        %1402 = vmatprep.subr.mxu0 0.0
        %1403 = vmatpush1.xpose.msra.mxu0 0.0
        %1404 = vmatprep.subr.mxu0 0.0
        %1405 = vmatpush1.xpose.msra.mxu0 0.0
        %1406 = vmatprep.subr.mxu0 0.0
        %1407 = vmatpush1.xpose.msra.mxu0 0.0
        %1408 = vmatprep.mubr.f32.mxu0 0.0
        %1409 = vmatmul.mubr.f32.gmra.mrb[0].mxu0 %v1340
        %v1410 = vpop.f32.mrb[0].mxu0
        %v1411 = vadd.f32 0.0, %v1410
        %v1412 = vpop.f32.mrb[0].mxu0
        %1413 = vdwg.mxu0
        %v1414 = vmul.f32 %v1411, 0.35355338
        %v1415 = vsel %vm490, %v1414, -inf
        %1416 = vmax.xlane.f32.xlu0 %v1415
        %v1417 = vpop.xlane.xlu0 %1416
        %v1418 = vsub.f32 %v1414, %v1417
        %v1419 = vmul.f32 %v1418, 1.442695
        %v1420 = vpow.pop %v1419
        %v1421 = vsel %vm490, %v1420, 0.0
        %1422 = vadd.xlane.f32.xlu0 %v1421
        %v1423 = vpop.xlane.xlu0 %1422
        %v1424 = vrcp.pop %v1423
        %v1425 = vmul.f32 %v1420, %v1424
        %1426 = vrot.lane.b32.xlu0 %v484, 56
        %v1427 = vpop.permute.xlu0 %1426
        %v1430 = vsel %vm490, %v1425, 0
        %1432 = vmatprep.subr.mxu0 0.0
        %1433 = vmatpush1.msra.mxu0 %v1427
        %1434 = vmatprep.subr.mxu0 0.0
        %1435 = vmatpush1.msra.mxu0 0.0
        %1436 = vmatprep.subr.mxu0 0.0
        %1437 = vmatpush1.msra.mxu0 0.0
        %1438 = vmatprep.subr.mxu0 0.0
        %1439 = vmatpush1.msra.mxu0 0.0
        %1440 = vmatprep.subr.mxu0 0.0
        %1441 = vmatpush1.msra.mxu0 0.0
        %1442 = vmatprep.subr.mxu0 0.0
        %1443 = vmatpush1.msra.mxu0 0.0
        %1444 = vmatprep.subr.mxu0 0.0
        %1445 = vmatpush1.msra.mxu0 0.0
        %1446 = vmatprep.subr.mxu0 0.0
        %1447 = vmatpush1.msra.mxu0 0.0
        %1448 = vmatprep.subr.mxu0 0.0
        %1449 = vmatpush1.msra.mxu0 0.0
        %1450 = vmatprep.subr.mxu0 0.0
        %1451 = vmatpush1.msra.mxu0 0.0
        %1452 = vmatprep.subr.mxu0 0.0
        %1453 = vmatpush1.msra.mxu0 0.0
        %1454 = vmatprep.subr.mxu0 0.0
        %1455 = vmatpush1.msra.mxu0 0.0
        %1456 = vmatprep.subr.mxu0 0.0
        %1457 = vmatpush1.msra.mxu0 0.0
        %1458 = vmatprep.subr.mxu0 0.0
        %1459 = vmatpush1.msra.mxu0 0.0
        %1460 = vmatprep.subr.mxu0 0.0
        %1461 = vmatpush1.msra.mxu0 0.0
        %1462 = vmatprep.subr.mxu0 0.0
        %1463 = vmatpush1.msra.mxu0 0.0
        %1464 = vmatprep.subr.mxu0 0.0
        %1465 = vmatpush1.msra.mxu0 0.0
        %1466 = vmatprep.subr.mxu0 0.0
        %1467 = vmatpush1.msra.mxu0 0.0
        %1468 = vmatprep.subr.mxu0 0.0
        %1469 = vmatpush1.msra.mxu0 0.0
        %1470 = vmatprep.subr.mxu0 0.0
        %1471 = vmatpush1.msra.mxu0 0.0
        %1472 = vmatprep.subr.mxu0 0.0
        %1473 = vmatpush1.msra.mxu0 0.0
        %1474 = vmatprep.subr.mxu0 0.0
        %1475 = vmatpush1.msra.mxu0 0.0
        %1476 = vmatprep.subr.mxu0 0.0
        %1477 = vmatpush1.msra.mxu0 0.0
        %1478 = vmatprep.subr.mxu0 0.0
        %1479 = vmatpush1.msra.mxu0 0.0
        %1480 = vmatprep.subr.mxu0 0.0
        %1481 = vmatpush1.msra.mxu0 0.0
        %1482 = vmatprep.subr.mxu0 0.0
        %1483 = vmatpush1.msra.mxu0 0.0
        %1484 = vmatprep.subr.mxu0 0.0
        %1485 = vmatpush1.msra.mxu0 0.0
        %1486 = vmatprep.subr.mxu0 0.0
        %1487 = vmatpush1.msra.mxu0 0.0
        %1488 = vmatprep.subr.mxu0 0.0
        %1489 = vmatpush1.msra.mxu0 0.0
        %1490 = vmatprep.subr.mxu0 0.0
        %1491 = vmatpush1.msra.mxu0 0.0
        %1492 = vmatprep.subr.mxu0 0.0
        %1493 = vmatpush1.msra.mxu0 0.0
        %1494 = vmatprep.subr.mxu0 0.0
        %1495 = vmatpush1.msra.mxu0 0.0
        %1496 = vmatprep.mubr.f32.mxu0 0.0
        %1497 = vmatmul.mubr.f32.gmra.mrb[0].mxu0 %v1430
        %v1498 = vpop.f32.mrb[0].mxu0
        %v1499 = vadd.f32 0.0, %v1498
        %v1500 = vpop.f32.mrb[0].mxu0
        %1501 = vdwg.mxu0
        %1503 = vrot.lane.b32.xlu0 %v1499, 8
        %v1504 = vpop.permute.xlu0 %1503
        %1506 = vst.msk [vmem:[#allocation3 + $0x8] sm:$0xff] %vm824, %v1504
        %1507 = vrot.lane.b32.xlu0 %v484, 112
        %v1508 = vpop.permute.xlu0 %1507
        %1509 = vrot.lane.b32.xlu0 %v484, 80
        %v1510 = vpop.permute.xlu0 %1509
        %v1511 = vsel %vm490, %v1508, 0
        %v1513 = vsel %vm490, %v1510, 0
        %1515 = vmatprep.subr.mxu0 0.0
        %1516 = vmatpush1.xpose.msra.mxu0 %v1513
        %1517 = vmatprep.subr.mxu0 0.0
        %1518 = vmatpush1.xpose.msra.mxu0 0.0
        %1519 = vmatprep.subr.mxu0 0.0
        %1520 = vmatpush1.xpose.msra.mxu0 0.0
        %1521 = vmatprep.subr.mxu0 0.0
        %1522 = vmatpush1.xpose.msra.mxu0 0.0
        %1523 = vmatprep.subr.mxu0 0.0
        %1524 = vmatpush1.xpose.msra.mxu0 0.0
        %1525 = vmatprep.subr.mxu0 0.0
        %1526 = vmatpush1.xpose.msra.mxu0 0.0
        %1527 = vmatprep.subr.mxu0 0.0
        %1528 = vmatpush1.xpose.msra.mxu0 0.0
        %1529 = vmatprep.subr.mxu0 0.0
        %1530 = vmatpush1.xpose.msra.mxu0 0.0
        %1531 = vmatprep.subr.mxu0 0.0
        %1532 = vmatpush1.xpose.msra.mxu0 0.0
        %1533 = vmatprep.subr.mxu0 0.0
        %1534 = vmatpush1.xpose.msra.mxu0 0.0
        %1535 = vmatprep.subr.mxu0 0.0
        %1536 = vmatpush1.xpose.msra.mxu0 0.0
        %1537 = vmatprep.subr.mxu0 0.0
        %1538 = vmatpush1.xpose.msra.mxu0 0.0
        %1539 = vmatprep.subr.mxu0 0.0
        %1540 = vmatpush1.xpose.msra.mxu0 0.0
        %1541 = vmatprep.subr.mxu0 0.0
        %1542 = vmatpush1.xpose.msra.mxu0 0.0
        %1543 = vmatprep.subr.mxu0 0.0
        %1544 = vmatpush1.xpose.msra.mxu0 0.0
        %1545 = vmatprep.subr.mxu0 0.0
        %1546 = vmatpush1.xpose.msra.mxu0 0.0
        %1547 = vmatprep.subr.mxu0 0.0
        %1548 = vmatpush1.xpose.msra.mxu0 0.0
        %1549 = vmatprep.subr.mxu0 0.0
        %1550 = vmatpush1.xpose.msra.mxu0 0.0
        %1551 = vmatprep.subr.mxu0 0.0
        %1552 = vmatpush1.xpose.msra.mxu0 0.0
        %1553 = vmatprep.subr.mxu0 0.0
        %1554 = vmatpush1.xpose.msra.mxu0 0.0
        %1555 = vmatprep.subr.mxu0 0.0
        %1556 = vmatpush1.xpose.msra.mxu0 0.0
        %1557 = vmatprep.subr.mxu0 0.0
        %1558 = vmatpush1.xpose.msra.mxu0 0.0
        %1559 = vmatprep.subr.mxu0 0.0
        %1560 = vmatpush1.xpose.msra.mxu0 0.0
        %1561 = vmatprep.subr.mxu0 0.0
        %1562 = vmatpush1.xpose.msra.mxu0 0.0
        %1563 = vmatprep.subr.mxu0 0.0
        %1564 = vmatpush1.xpose.msra.mxu0 0.0
        %1565 = vmatprep.subr.mxu0 0.0
        %1566 = vmatpush1.xpose.msra.mxu0 0.0
        %1567 = vmatprep.subr.mxu0 0.0
        %1568 = vmatpush1.xpose.msra.mxu0 0.0
        %1569 = vmatprep.subr.mxu0 0.0
        %1570 = vmatpush1.xpose.msra.mxu0 0.0
        %1571 = vmatprep.subr.mxu0 0.0
        %1572 = vmatpush1.xpose.msra.mxu0 0.0
        %1573 = vmatprep.subr.mxu0 0.0
        %1574 = vmatpush1.xpose.msra.mxu0 0.0
        %1575 = vmatprep.subr.mxu0 0.0
        %1576 = vmatpush1.xpose.msra.mxu0 0.0
        %1577 = vmatprep.subr.mxu0 0.0
        %1578 = vmatpush1.xpose.msra.mxu0 0.0
        %1579 = vmatprep.mubr.f32.mxu0 0.0
        %1580 = vmatmul.mubr.f32.gmra.mrb[0].mxu0 %v1511
        %v1581 = vpop.f32.mrb[0].mxu0
        %v1582 = vadd.f32 0.0, %v1581
        %v1583 = vpop.f32.mrb[0].mxu0
        %1584 = vdwg.mxu0
        %v1585 = vmul.f32 %v1582, 0.35355338
        %v1586 = vsel %vm490, %v1585, -inf
        %1587 = vmax.xlane.f32.xlu0 %v1586
        %v1588 = vpop.xlane.xlu0 %1587
        %v1589 = vsub.f32 %v1585, %v1588
        %v1590 = vmul.f32 %v1589, 1.442695
        %v1591 = vpow.pop %v1590
        %v1592 = vsel %vm490, %v1591, 0.0
        %1593 = vadd.xlane.f32.xlu0 %v1592
        %v1594 = vpop.xlane.xlu0 %1593
        %v1595 = vrcp.pop %v1594
        %v1596 = vmul.f32 %v1591, %v1595
        %1597 = vrot.lane.b32.xlu0 %v484, 48
        %v1598 = vpop.permute.xlu0 %1597
        %v1601 = vsel %vm490, %v1596, 0
        %1603 = vmatprep.subr.mxu0 0.0
        %1604 = vmatpush1.msra.mxu0 %v1598
        %1605 = vmatprep.subr.mxu0 0.0
        %1606 = vmatpush1.msra.mxu0 0.0
        %1607 = vmatprep.subr.mxu0 0.0
        %1608 = vmatpush1.msra.mxu0 0.0
        %1609 = vmatprep.subr.mxu0 0.0
        %1610 = vmatpush1.msra.mxu0 0.0
        %1611 = vmatprep.subr.mxu0 0.0
        %1612 = vmatpush1.msra.mxu0 0.0
        %1613 = vmatprep.subr.mxu0 0.0
        %1614 = vmatpush1.msra.mxu0 0.0
        %1615 = vmatprep.subr.mxu0 0.0
        %1616 = vmatpush1.msra.mxu0 0.0
        %1617 = vmatprep.subr.mxu0 0.0
        %1618 = vmatpush1.msra.mxu0 0.0
        %1619 = vmatprep.subr.mxu0 0.0
        %1620 = vmatpush1.msra.mxu0 0.0
        %1621 = vmatprep.subr.mxu0 0.0
        %1622 = vmatpush1.msra.mxu0 0.0
        %1623 = vmatprep.subr.mxu0 0.0
        %1624 = vmatpush1.msra.mxu0 0.0
        %1625 = vmatprep.subr.mxu0 0.0
        %1626 = vmatpush1.msra.mxu0 0.0
        %1627 = vmatprep.subr.mxu0 0.0
        %1628 = vmatpush1.msra.mxu0 0.0
        %1629 = vmatprep.subr.mxu0 0.0
        %1630 = vmatpush1.msra.mxu0 0.0
        %1631 = vmatprep.subr.mxu0 0.0
        %1632 = vmatpush1.msra.mxu0 0.0
        %1633 = vmatprep.subr.mxu0 0.0
        %1634 = vmatpush1.msra.mxu0 0.0
        %1635 = vmatprep.subr.mxu0 0.0
        %1636 = vmatpush1.msra.mxu0 0.0
        %1637 = vmatprep.subr.mxu0 0.0
        %1638 = vmatpush1.msra.mxu0 0.0
        %1639 = vmatprep.subr.mxu0 0.0
        %1640 = vmatpush1.msra.mxu0 0.0
        %1641 = vmatprep.subr.mxu0 0.0
        %1642 = vmatpush1.msra.mxu0 0.0
        %1643 = vmatprep.subr.mxu0 0.0
        %1644 = vmatpush1.msra.mxu0 0.0
        %1645 = vmatprep.subr.mxu0 0.0
        %1646 = vmatpush1.msra.mxu0 0.0
        %1647 = vmatprep.subr.mxu0 0.0
        %1648 = vmatpush1.msra.mxu0 0.0
        %1649 = vmatprep.subr.mxu0 0.0
        %1650 = vmatpush1.msra.mxu0 0.0
        %1651 = vmatprep.subr.mxu0 0.0
        %1652 = vmatpush1.msra.mxu0 0.0
        %1653 = vmatprep.subr.mxu0 0.0
        %1654 = vmatpush1.msra.mxu0 0.0
        %1655 = vmatprep.subr.mxu0 0.0
        %1656 = vmatpush1.msra.mxu0 0.0
        %1657 = vmatprep.subr.mxu0 0.0
        %1658 = vmatpush1.msra.mxu0 0.0
        %1659 = vmatprep.subr.mxu0 0.0
        %1660 = vmatpush1.msra.mxu0 0.0
        %1661 = vmatprep.subr.mxu0 0.0
        %1662 = vmatpush1.msra.mxu0 0.0
        %1663 = vmatprep.subr.mxu0 0.0
        %1664 = vmatpush1.msra.mxu0 0.0
        %1665 = vmatprep.subr.mxu0 0.0
        %1666 = vmatpush1.msra.mxu0 0.0
        %1667 = vmatprep.mubr.f32.mxu0 0.0
        %1668 = vmatmul.mubr.f32.gmra.mrb[0].mxu0 %v1601
        %v1669 = vpop.f32.mrb[0].mxu0
        %v1670 = vadd.f32 0.0, %v1669
        %v1671 = vpop.f32.mrb[0].mxu0
        %1672 = vdwg.mxu0
        %1674 = vrot.lane.b32.xlu0 %v1670, 16
        %v1675 = vpop.permute.xlu0 %1674
        %1677 = vst.msk [vmem:[#allocation3 + $0x8] sm:$0xff] %vm996, %v1675
        %1678 = vrot.lane.b32.xlu0 %v484, 104
        %v1679 = vpop.permute.xlu0 %1678
        %1680 = vrot.lane.b32.xlu0 %v484, 72
        %v1681 = vpop.permute.xlu0 %1680
        %v1682 = vsel %vm490, %v1679, 0
        %v1684 = vsel %vm490, %v1681, 0
        %1686 = vmatprep.subr.mxu0 0.0
        %1687 = vmatpush1.xpose.msra.mxu0 %v1684
        %1688 = vmatprep.subr.mxu0 0.0
        %1689 = vmatpush1.xpose.msra.mxu0 0.0
        %1690 = vmatprep.subr.mxu0 0.0
        %1691 = vmatpush1.xpose.msra.mxu0 0.0
        %1692 = vmatprep.subr.mxu0 0.0
        %1693 = vmatpush1.xpose.msra.mxu0 0.0
        %1694 = vmatprep.subr.mxu0 0.0
        %1695 = vmatpush1.xpose.msra.mxu0 0.0
        %1696 = vmatprep.subr.mxu0 0.0
        %1697 = vmatpush1.xpose.msra.mxu0 0.0
        %1698 = vmatprep.subr.mxu0 0.0
        %1699 = vmatpush1.xpose.msra.mxu0 0.0
        %1700 = vmatprep.subr.mxu0 0.0
        %1701 = vmatpush1.xpose.msra.mxu0 0.0
        %1702 = vmatprep.subr.mxu0 0.0
        %1703 = vmatpush1.xpose.msra.mxu0 0.0
        %1704 = vmatprep.subr.mxu0 0.0
        %1705 = vmatpush1.xpose.msra.mxu0 0.0
        %1706 = vmatprep.subr.mxu0 0.0
        %1707 = vmatpush1.xpose.msra.mxu0 0.0
        %1708 = vmatprep.subr.mxu0 0.0
        %1709 = vmatpush1.xpose.msra.mxu0 0.0
        %1710 = vmatprep.subr.mxu0 0.0
        %1711 = vmatpush1.xpose.msra.mxu0 0.0
        %1712 = vmatprep.subr.mxu0 0.0
        %1713 = vmatpush1.xpose.msra.mxu0 0.0
        %1714 = vmatprep.subr.mxu0 0.0
        %1715 = vmatpush1.xpose.msra.mxu0 0.0
        %1716 = vmatprep.subr.mxu0 0.0
        %1717 = vmatpush1.xpose.msra.mxu0 0.0
        %1718 = vmatprep.subr.mxu0 0.0
        %1719 = vmatpush1.xpose.msra.mxu0 0.0
        %1720 = vmatprep.subr.mxu0 0.0
        %1721 = vmatpush1.xpose.msra.mxu0 0.0
        %1722 = vmatprep.subr.mxu0 0.0
        %1723 = vmatpush1.xpose.msra.mxu0 0.0
        %1724 = vmatprep.subr.mxu0 0.0
        %1725 = vmatpush1.xpose.msra.mxu0 0.0
        %1726 = vmatprep.subr.mxu0 0.0
        %1727 = vmatpush1.xpose.msra.mxu0 0.0
        %1728 = vmatprep.subr.mxu0 0.0
        %1729 = vmatpush1.xpose.msra.mxu0 0.0
        %1730 = vmatprep.subr.mxu0 0.0
        %1731 = vmatpush1.xpose.msra.mxu0 0.0
        %1732 = vmatprep.subr.mxu0 0.0
        %1733 = vmatpush1.xpose.msra.mxu0 0.0
        %1734 = vmatprep.subr.mxu0 0.0
        %1735 = vmatpush1.xpose.msra.mxu0 0.0
        %1736 = vmatprep.subr.mxu0 0.0
        %1737 = vmatpush1.xpose.msra.mxu0 0.0
        %1738 = vmatprep.subr.mxu0 0.0
        %1739 = vmatpush1.xpose.msra.mxu0 0.0
        %1740 = vmatprep.subr.mxu0 0.0
        %1741 = vmatpush1.xpose.msra.mxu0 0.0
        %1742 = vmatprep.subr.mxu0 0.0
        %1743 = vmatpush1.xpose.msra.mxu0 0.0
        %1744 = vmatprep.subr.mxu0 0.0
        %1745 = vmatpush1.xpose.msra.mxu0 0.0
        %1746 = vmatprep.subr.mxu0 0.0
        %1747 = vmatpush1.xpose.msra.mxu0 0.0
        %1748 = vmatprep.subr.mxu0 0.0
        %1749 = vmatpush1.xpose.msra.mxu0 0.0
        %1750 = vmatprep.mubr.f32.mxu0 0.0
        %1751 = vmatmul.mubr.f32.gmra.mrb[0].mxu0 %v1682
        %v1752 = vpop.f32.mrb[0].mxu0
        %v1753 = vadd.f32 0.0, %v1752
        %v1754 = vpop.f32.mrb[0].mxu0
        %1755 = vdwg.mxu0
        %v1756 = vmul.f32 %v1753, 0.35355338
        %v1757 = vsel %vm490, %v1756, -inf
        %1758 = vmax.xlane.f32.xlu0 %v1757
        %v1759 = vpop.xlane.xlu0 %1758
        %v1760 = vsub.f32 %v1756, %v1759
        %v1761 = vmul.f32 %v1760, 1.442695
        %v1762 = vpow.pop %v1761
        %v1763 = vsel %vm490, %v1762, 0.0
        %1764 = vadd.xlane.f32.xlu0 %v1763
        %v1765 = vpop.xlane.xlu0 %1764
        %v1766 = vrcp.pop %v1765
        %v1767 = vmul.f32 %v1762, %v1766
        %1768 = vrot.lane.b32.xlu0 %v484, 40
        %v1769 = vpop.permute.xlu0 %1768
        %v1772 = vsel %vm490, %v1767, 0
        %1774 = vmatprep.subr.mxu0 0.0
        %1775 = vmatpush1.msra.mxu0 %v1769
        %1776 = vmatprep.subr.mxu0 0.0
        %1777 = vmatpush1.msra.mxu0 0.0
        %1778 = vmatprep.subr.mxu0 0.0
        %1779 = vmatpush1.msra.mxu0 0.0
        %1780 = vmatprep.subr.mxu0 0.0
        %1781 = vmatpush1.msra.mxu0 0.0
        %1782 = vmatprep.subr.mxu0 0.0
        %1783 = vmatpush1.msra.mxu0 0.0
        %1784 = vmatprep.subr.mxu0 0.0
        %1785 = vmatpush1.msra.mxu0 0.0
        %1786 = vmatprep.subr.mxu0 0.0
        %1787 = vmatpush1.msra.mxu0 0.0
        %1788 = vmatprep.subr.mxu0 0.0
        %1789 = vmatpush1.msra.mxu0 0.0
        %1790 = vmatprep.subr.mxu0 0.0
        %1791 = vmatpush1.msra.mxu0 0.0
        %1792 = vmatprep.subr.mxu0 0.0
        %1793 = vmatpush1.msra.mxu0 0.0
        %1794 = vmatprep.subr.mxu0 0.0
        %1795 = vmatpush1.msra.mxu0 0.0
        %1796 = vmatprep.subr.mxu0 0.0
        %1797 = vmatpush1.msra.mxu0 0.0
        %1798 = vmatprep.subr.mxu0 0.0
        %1799 = vmatpush1.msra.mxu0 0.0
        %1800 = vmatprep.subr.mxu0 0.0
        %1801 = vmatpush1.msra.mxu0 0.0
        %1802 = vmatprep.subr.mxu0 0.0
        %1803 = vmatpush1.msra.mxu0 0.0
        %1804 = vmatprep.subr.mxu0 0.0
        %1805 = vmatpush1.msra.mxu0 0.0
        %1806 = vmatprep.subr.mxu0 0.0
        %1807 = vmatpush1.msra.mxu0 0.0
        %1808 = vmatprep.subr.mxu0 0.0
        %1809 = vmatpush1.msra.mxu0 0.0
        %1810 = vmatprep.subr.mxu0 0.0
        %1811 = vmatpush1.msra.mxu0 0.0
        %1812 = vmatprep.subr.mxu0 0.0
        %1813 = vmatpush1.msra.mxu0 0.0
        %1814 = vmatprep.subr.mxu0 0.0
        %1815 = vmatpush1.msra.mxu0 0.0
        %1816 = vmatprep.subr.mxu0 0.0
        %1817 = vmatpush1.msra.mxu0 0.0
        %1818 = vmatprep.subr.mxu0 0.0
        %1819 = vmatpush1.msra.mxu0 0.0
        %1820 = vmatprep.subr.mxu0 0.0
        %1821 = vmatpush1.msra.mxu0 0.0
        %1822 = vmatprep.subr.mxu0 0.0
        %1823 = vmatpush1.msra.mxu0 0.0
        %1824 = vmatprep.subr.mxu0 0.0
        %1825 = vmatpush1.msra.mxu0 0.0
        %1826 = vmatprep.subr.mxu0 0.0
        %1827 = vmatpush1.msra.mxu0 0.0
        %1828 = vmatprep.subr.mxu0 0.0
        %1829 = vmatpush1.msra.mxu0 0.0
        %1830 = vmatprep.subr.mxu0 0.0
        %1831 = vmatpush1.msra.mxu0 0.0
        %1832 = vmatprep.subr.mxu0 0.0
        %1833 = vmatpush1.msra.mxu0 0.0
        %1834 = vmatprep.subr.mxu0 0.0
        %1835 = vmatpush1.msra.mxu0 0.0
        %1836 = vmatprep.subr.mxu0 0.0
        %1837 = vmatpush1.msra.mxu0 0.0
        %1838 = vmatprep.mubr.f32.mxu0 0.0
        %1839 = vmatmul.mubr.f32.gmra.mrb[0].mxu0 %v1772
        %v1840 = vpop.f32.mrb[0].mxu0
        %v1841 = vadd.f32 0.0, %v1840
        %v1842 = vpop.f32.mrb[0].mxu0
        %1843 = vdwg.mxu0
        %1845 = vrot.lane.b32.xlu0 %v1841, 24
        %v1846 = vpop.permute.xlu0 %1845
        %1848 = vst.msk [vmem:[#allocation3 + $0x8] sm:$0xff] %vm1168, %v1846
        %v1849 = vld [vmem:[#allocation3] sm:$0xff]
        %v1850 = vld [vmem:[#allocation3 + $0x8] sm:$0xff]
        %v1851 = vld [vmem:[%s370] sm:$0xff]
        %v1852 = vld [vmem:[%s370 + $0x8] sm:$0xff]
        %v1853 = vld [vmem:[%s370 + $0x10] sm:$0xff]
        %v1854 = vld [vmem:[%s370 + $0x18] sm:$0xff]
        %v1855 = vlaneseq
        %v1856 = vshrl.u32 %v1855, 7
        %v1857 = vsub.s32 1, %v1856
        %v1858 = vrot.slane %v396, %v1857
        %v1860 = vsel %vm405, %v1849, 0
        %v1863 = vsel %vm405, %v1850, 0
        %1865 = vmatprep.subr.mxu0 0.0
        %1866 = vmatpush1.msra.mxu0 %v1851
        %1867 = vmatprep.subr.mxu0 0.0
        %1868 = vmatpush1.msra.mxu0 %v1852
        %1869 = vmatprep.subr.mxu0 0.0
        %1870 = vmatpush1.msra.mxu0 %v1853
        %1871 = vmatprep.subr.mxu0 0.0
        %1872 = vmatpush1.msra.mxu0 %v1854
        %1873 = vmatprep.subr.mxu0 0.0
        %1874 = vmatpush1.msra.mxu0 0.0
        %1875 = vmatprep.subr.mxu0 0.0
        %1876 = vmatpush1.msra.mxu0 0.0
        %1877 = vmatprep.subr.mxu0 0.0
        %1878 = vmatpush1.msra.mxu0 0.0
        %1879 = vmatprep.subr.mxu0 0.0
        %1880 = vmatpush1.msra.mxu0 0.0
        %1881 = vmatprep.subr.mxu0 0.0
        %1882 = vmatpush1.msra.mxu0 0.0
        %1883 = vmatprep.subr.mxu0 0.0
        %1884 = vmatpush1.msra.mxu0 0.0
        %1885 = vmatprep.subr.mxu0 0.0
        %1886 = vmatpush1.msra.mxu0 0.0
        %1887 = vmatprep.subr.mxu0 0.0
        %1888 = vmatpush1.msra.mxu0 0.0
        %1889 = vmatprep.subr.mxu0 0.0
        %1890 = vmatpush1.msra.mxu0 0.0
        %1891 = vmatprep.subr.mxu0 0.0
        %1892 = vmatpush1.msra.mxu0 0.0
        %1893 = vmatprep.subr.mxu0 0.0
        %1894 = vmatpush1.msra.mxu0 0.0
        %1895 = vmatprep.subr.mxu0 0.0
        %1896 = vmatpush1.msra.mxu0 0.0
        %1897 = vmatprep.subr.mxu0 0.0
        %1898 = vmatpush1.msra.mxu0 0.0
        %1899 = vmatprep.subr.mxu0 0.0
        %1900 = vmatpush1.msra.mxu0 0.0
        %1901 = vmatprep.subr.mxu0 0.0
        %1902 = vmatpush1.msra.mxu0 0.0
        %1903 = vmatprep.subr.mxu0 0.0
        %1904 = vmatpush1.msra.mxu0 0.0
        %1905 = vmatprep.subr.mxu0 0.0
        %1906 = vmatpush1.msra.mxu0 0.0
        %1907 = vmatprep.subr.mxu0 0.0
        %1908 = vmatpush1.msra.mxu0 0.0
        %1909 = vmatprep.subr.mxu0 0.0
        %1910 = vmatpush1.msra.mxu0 0.0
        %1911 = vmatprep.subr.mxu0 0.0
        %1912 = vmatpush1.msra.mxu0 0.0
        %1913 = vmatprep.subr.mxu0 0.0
        %1914 = vmatpush1.msra.mxu0 0.0
        %1915 = vmatprep.subr.mxu0 0.0
        %1916 = vmatpush1.msra.mxu0 0.0
        %1917 = vmatprep.subr.mxu0 0.0
        %1918 = vmatpush1.msra.mxu0 0.0
        %1919 = vmatprep.subr.mxu0 0.0
        %1920 = vmatpush1.msra.mxu0 0.0
        %1921 = vmatprep.subr.mxu0 0.0
        %1922 = vmatpush1.msra.mxu0 0.0
        %1923 = vmatprep.subr.mxu0 0.0
        %1924 = vmatpush1.msra.mxu0 0.0
        %1925 = vmatprep.subr.mxu0 0.0
        %1926 = vmatpush1.msra.mxu0 0.0
        %1927 = vmatprep.subr.mxu0 0.0
        %1928 = vmatpush1.msra.mxu0 0.0
        %1929 = vmatprep.mubr.f32.mxu0 0.0
        %1930 = vmatmul.mubr.f32.gmra.mrb[0].mxu0 %v1860
        %v1931 = vpop.f32.mrb[0].mxu0
        %v1932 = vadd.f32 %v1858, %v1931
        %v1933 = vpop.f32.mrb[0].mxu0
        %1934 = vmatprep.mubr.f32.mxu0 0.0
        %1935 = vmatmul.mubr.f32.gmra.mrb[0].mxu0 %v1863
        %v1936 = vpop.f32.mrb[0].mxu0
        %v1937 = vadd.f32 %v1858, %v1936
        %v1938 = vpop.f32.mrb[0].mxu0
        %1939 = vdwg.mxu0
        %v1940 = vadd.f32 %v1932, %v394
        %v1941 = vadd.f32 %v1937, %v395
        %v1942 = vsel %vm405, %v1940, 0.0
        %1943 = vadd.xlane.f32.xlu0 %v1942
        %v1944 = vpop.xlane.xlu0 %1943
        %v1945 = vsel %vm405, %v1941, 0.0
        %1946 = vadd.xlane.f32.xlu0 %v1945
        %v1947 = vpop.xlane.xlu0 %1946
        %v1948 = vrcp.pop 32.0
        %v1949 = vmul.f32 %v1944, %v1948
        %v1950 = vmul.f32 %v1947, %v1948
        %v1951 = vsub.f32 %v1940, %v1949
        %v1952 = vsub.f32 %v1941, %v1950
        %v1953 = vmul.f32 %v1951, %v1951
        %v1954 = vmul.f32 %v1952, %v1952
        %v1955 = vsel %vm405, %v1953, 0.0
        %1956 = vadd.xlane.f32.xlu0 %v1955
        %v1957 = vpop.xlane.xlu0 %1956
        %v1958 = vsel %vm405, %v1954, 0.0
        %1959 = vadd.xlane.f32.xlu0 %v1958
        %v1960 = vpop.xlane.xlu0 %1959
        %v1961 = vmul.f32 %v1957, %v1948
        %v1962 = vmul.f32 %v1960, %v1948
        %v1963 = vadd.f32 %v1961, 1e-05
        %v1964 = vadd.f32 %v1962, 1e-05
        %v1965 = vrsqrt.pop %v1963
        %v1966 = vrsqrt.pop %v1964
        %v1967 = vmul.f32 %v1951, %v1965
        %v1968 = vmul.f32 %v1952, %v1966
        %v1969 = vlaneseq
        %v1970 = vshrl.u32 %v1969, 7
        %v1971 = vsub.s32 4, %v1970
        %v1972 = vrot.slane %v396, %v1971
        %v1973 = vmul.f32 %v1967, %v1972
        %v1974 = vmul.f32 %v1968, %v1972
        %v1975 = vlaneseq
        %v1976 = vshrl.u32 %v1975, 7
        %v1977 = vsub.s32 5, %v1976
        %v1978 = vrot.slane %v396, %v1977
        %v1979 = vadd.f32 %v1973, %v1978
        %v1980 = vadd.f32 %v1974, %v1978
        %v1981 = vld [vmem:[%s375] sm:$0xff]
        %v1982 = vld [vmem:[%s375 + $0x8] sm:$0xff]
        %v1983 = vld [vmem:[%s375 + $0x10] sm:$0xff]
        %v1984 = vld [vmem:[%s375 + $0x18] sm:$0xff]
        %v1985 = vlaneseq
        %v1986 = vshrl.u32 %v1985, 7
        %v1987 = vsub.s32 2, %v1986
        %v1988 = vrot.slane %v396, %v1987
        %v1990 = vsel %vm405, %v1979, 0
        %v1993 = vsel %vm405, %v1980, 0
        %1995 = vmatprep.subr.mxu0 0.0
        %1996 = vmatpush1.msra.mxu0 %v1981
        %1997 = vmatprep.subr.mxu0 0.0
        %1998 = vmatpush1.msra.mxu0 %v1982
        %1999 = vmatprep.subr.mxu0 0.0
        %2000 = vmatpush1.msra.mxu0 %v1983
        %2001 = vmatprep.subr.mxu0 0.0
        %2002 = vmatpush1.msra.mxu0 %v1984
        %2003 = vmatprep.subr.mxu0 0.0
        %2004 = vmatpush1.msra.mxu0 0.0
        %2005 = vmatprep.subr.mxu0 0.0
        %2006 = vmatpush1.msra.mxu0 0.0
        %2007 = vmatprep.subr.mxu0 0.0
        %2008 = vmatpush1.msra.mxu0 0.0
        %2009 = vmatprep.subr.mxu0 0.0
        %2010 = vmatpush1.msra.mxu0 0.0
        %2011 = vmatprep.subr.mxu0 0.0
        %2012 = vmatpush1.msra.mxu0 0.0
        %2013 = vmatprep.subr.mxu0 0.0
        %2014 = vmatpush1.msra.mxu0 0.0
        %2015 = vmatprep.subr.mxu0 0.0
        %2016 = vmatpush1.msra.mxu0 0.0
        %2017 = vmatprep.subr.mxu0 0.0
        %2018 = vmatpush1.msra.mxu0 0.0
        %2019 = vmatprep.subr.mxu0 0.0
        %2020 = vmatpush1.msra.mxu0 0.0
        %2021 = vmatprep.subr.mxu0 0.0
        %2022 = vmatpush1.msra.mxu0 0.0
        %2023 = vmatprep.subr.mxu0 0.0
        %2024 = vmatpush1.msra.mxu0 0.0
        %2025 = vmatprep.subr.mxu0 0.0
        %2026 = vmatpush1.msra.mxu0 0.0
        %2027 = vmatprep.subr.mxu0 0.0
        %2028 = vmatpush1.msra.mxu0 0.0
        %2029 = vmatprep.subr.mxu0 0.0
        %2030 = vmatpush1.msra.mxu0 0.0
        %2031 = vmatprep.subr.mxu0 0.0
        %2032 = vmatpush1.msra.mxu0 0.0
        %2033 = vmatprep.subr.mxu0 0.0
        %2034 = vmatpush1.msra.mxu0 0.0
        %2035 = vmatprep.subr.mxu0 0.0
        %2036 = vmatpush1.msra.mxu0 0.0
        %2037 = vmatprep.subr.mxu0 0.0
        %2038 = vmatpush1.msra.mxu0 0.0
        %2039 = vmatprep.subr.mxu0 0.0
        %2040 = vmatpush1.msra.mxu0 0.0
        %2041 = vmatprep.subr.mxu0 0.0
        %2042 = vmatpush1.msra.mxu0 0.0
        %2043 = vmatprep.subr.mxu0 0.0
        %2044 = vmatpush1.msra.mxu0 0.0
        %2045 = vmatprep.subr.mxu0 0.0
        %2046 = vmatpush1.msra.mxu0 0.0
        %2047 = vmatprep.subr.mxu0 0.0
        %2048 = vmatpush1.msra.mxu0 0.0
        %2049 = vmatprep.subr.mxu0 0.0
        %2050 = vmatpush1.msra.mxu0 0.0
        %2051 = vmatprep.subr.mxu0 0.0
        %2052 = vmatpush1.msra.mxu0 0.0
        %2053 = vmatprep.subr.mxu0 0.0
        %2054 = vmatpush1.msra.mxu0 0.0
        %2055 = vmatprep.subr.mxu0 0.0
        %2056 = vmatpush1.msra.mxu0 0.0
        %2057 = vmatprep.subr.mxu0 0.0
        %2058 = vmatpush1.msra.mxu0 0.0
        %2059 = vmatprep.mubr.f32.mxu0 0.0
        %2060 = vmatmul.mubr.f32.gmra.mrb[0].mxu0 %v1990
        %v2061 = vpop.f32.mrb[0].mxu0
        %v2062 = vadd.f32 %v1988, %v2061
        %v2063 = vpop.f32.mrb[0].mxu0
        %2064 = vmatprep.mubr.f32.mxu0 0.0
        %2065 = vmatmul.mubr.f32.gmra.mrb[0].mxu0 %v1993
        %v2066 = vpop.f32.mrb[0].mxu0
        %v2067 = vadd.f32 %v1988, %v2066
        %v2068 = vpop.f32.mrb[0].mxu0
        %2069 = vdwg.mxu0
        %v2070 = vmax.f32 %v2062, 0.0
        %v2071 = vmax.f32 %v2067, 0.0
        %v2072 = vld [vmem:[%s380] sm:$0xff]
        %v2073 = vld [vmem:[%s380 + $0x8] sm:$0xff]
        %v2074 = vld [vmem:[%s380 + $0x10] sm:$0xff]
        %v2075 = vld [vmem:[%s380 + $0x18] sm:$0xff]
        %v2076 = vld [vmem:[%s380 + $0x20] sm:$0xff]
        %v2077 = vld [vmem:[%s380 + $0x28] sm:$0xff]
        %v2078 = vld [vmem:[%s380 + $0x30] sm:$0xff]
        %v2079 = vld [vmem:[%s380 + $0x38] sm:$0xff]
        %v2080 = vld [vmem:[%s380 + $0x40] sm:$0xff]
        %v2081 = vld [vmem:[%s380 + $0x48] sm:$0xff]
        %v2082 = vld [vmem:[%s380 + $0x50] sm:$0xff]
        %v2083 = vld [vmem:[%s380 + $0x58] sm:$0xff]
        %v2084 = vld [vmem:[%s380 + $0x60] sm:$0xff]
        %v2085 = vld [vmem:[%s380 + $0x68] sm:$0xff]
        %v2086 = vld [vmem:[%s380 + $0x70] sm:$0xff]
        %v2087 = vld [vmem:[%s380 + $0x78] sm:$0xff]
        %v2088 = vlaneseq
        %v2089 = vshrl.u32 %v2088, 7
        %v2090 = vsub.s32 3, %v2089
        %v2091 = vrot.slane %v396, %v2090
        %2092 = vmatprep.subr.mxu0 0.0
        %2093 = vmatpush1.msra.mxu0 %v2072
        %2094 = vmatprep.subr.mxu0 0.0
        %2095 = vmatpush1.msra.mxu0 %v2073
        %2096 = vmatprep.subr.mxu0 0.0
        %2097 = vmatpush1.msra.mxu0 %v2074
        %2098 = vmatprep.subr.mxu0 0.0
        %2099 = vmatpush1.msra.mxu0 %v2075
        %2100 = vmatprep.subr.mxu0 0.0
        %2101 = vmatpush1.msra.mxu0 %v2076
        %2102 = vmatprep.subr.mxu0 0.0
        %2103 = vmatpush1.msra.mxu0 %v2077
        %2104 = vmatprep.subr.mxu0 0.0
        %2105 = vmatpush1.msra.mxu0 %v2078
        %2106 = vmatprep.subr.mxu0 0.0
        %2107 = vmatpush1.msra.mxu0 %v2079
        %2108 = vmatprep.subr.mxu0 0.0
        %2109 = vmatpush1.msra.mxu0 %v2080
        %2110 = vmatprep.subr.mxu0 0.0
        %2111 = vmatpush1.msra.mxu0 %v2081
        %2112 = vmatprep.subr.mxu0 0.0
        %2113 = vmatpush1.msra.mxu0 %v2082
        %2114 = vmatprep.subr.mxu0 0.0
        %2115 = vmatpush1.msra.mxu0 %v2083
        %2116 = vmatprep.subr.mxu0 0.0
        %2117 = vmatpush1.msra.mxu0 %v2084
        %2118 = vmatprep.subr.mxu0 0.0
        %2119 = vmatpush1.msra.mxu0 %v2085
        %2120 = vmatprep.subr.mxu0 0.0
        %2121 = vmatpush1.msra.mxu0 %v2086
        %2122 = vmatprep.subr.mxu0 0.0
        %2123 = vmatpush1.msra.mxu0 %v2087
        %2124 = vmatprep.subr.mxu0 0.0
        %2125 = vmatpush1.msra.mxu0 0.0
        %2126 = vmatprep.subr.mxu0 0.0
        %2127 = vmatpush1.msra.mxu0 0.0
        %2128 = vmatprep.subr.mxu0 0.0
        %2129 = vmatpush1.msra.mxu0 0.0
        %2130 = vmatprep.subr.mxu0 0.0
        %2131 = vmatpush1.msra.mxu0 0.0
        %2132 = vmatprep.subr.mxu0 0.0
        %2133 = vmatpush1.msra.mxu0 0.0
        %2134 = vmatprep.subr.mxu0 0.0
        %2135 = vmatpush1.msra.mxu0 0.0
        %2136 = vmatprep.subr.mxu0 0.0
        %2137 = vmatpush1.msra.mxu0 0.0
        %2138 = vmatprep.subr.mxu0 0.0
        %2139 = vmatpush1.msra.mxu0 0.0
        %2140 = vmatprep.subr.mxu0 0.0
        %2141 = vmatpush1.msra.mxu0 0.0
        %2142 = vmatprep.subr.mxu0 0.0
        %2143 = vmatpush1.msra.mxu0 0.0
        %2144 = vmatprep.subr.mxu0 0.0
        %2145 = vmatpush1.msra.mxu0 0.0
        %2146 = vmatprep.subr.mxu0 0.0
        %2147 = vmatpush1.msra.mxu0 0.0
        %2148 = vmatprep.subr.mxu0 0.0
        %2149 = vmatpush1.msra.mxu0 0.0
        %2150 = vmatprep.subr.mxu0 0.0
        %2151 = vmatpush1.msra.mxu0 0.0
        %2152 = vmatprep.subr.mxu0 0.0
        %2153 = vmatpush1.msra.mxu0 0.0
        %2154 = vmatprep.subr.mxu0 0.0
        %2155 = vmatpush1.msra.mxu0 0.0
        %2156 = vmatprep.mubr.f32.mxu0 0.0
        %2157 = vmatmul.mubr.f32.gmra.mrb[0].mxu0 %v2070
        %v2158 = vpop.f32.mrb[0].mxu0
        %v2159 = vadd.f32 %v2091, %v2158
        %v2160 = vpop.f32.mrb[0].mxu0
        %2161 = vmatprep.mubr.f32.mxu0 0.0
        %2162 = vmatmul.mubr.f32.gmra.mrb[0].mxu0 %v2071
        %v2163 = vpop.f32.mrb[0].mxu0
        %v2164 = vadd.f32 %v2091, %v2163
        %v2165 = vpop.f32.mrb[0].mxu0
        %2166 = vdwg.mxu0
        %v2167 = vadd.f32 %v2159, %v1979
        %v2168 = vadd.f32 %v2164, %v1980
        %v2169 = vsel %vm405, %v2167, 0.0
        %2170 = vadd.xlane.f32.xlu0 %v2169
        %v2171 = vpop.xlane.xlu0 %2170
        %v2172 = vsel %vm405, %v2168, 0.0
        %2173 = vadd.xlane.f32.xlu0 %v2172
        %v2174 = vpop.xlane.xlu0 %2173
        %v2175 = vmul.f32 %v2171, %v1948
        %v2176 = vmul.f32 %v2174, %v1948
        %v2177 = vsub.f32 %v2167, %v2175
        %v2178 = vsub.f32 %v2168, %v2176
        %v2179 = vmul.f32 %v2177, %v2177
        %v2180 = vmul.f32 %v2178, %v2178
        %v2181 = vsel %vm405, %v2179, 0.0
        %2182 = vadd.xlane.f32.xlu0 %v2181
        %v2183 = vpop.xlane.xlu0 %2182
        %v2184 = vsel %vm405, %v2180, 0.0
        %2185 = vadd.xlane.f32.xlu0 %v2184
        %v2186 = vpop.xlane.xlu0 %2185
        %v2187 = vmul.f32 %v2183, %v1948
        %v2188 = vmul.f32 %v2186, %v1948
        %v2189 = vadd.f32 %v2187, 1e-05
        %v2190 = vadd.f32 %v2188, 1e-05
        %v2191 = vrsqrt.pop %v2189
        %v2192 = vrsqrt.pop %v2190
        %v2193 = vmul.f32 %v2177, %v2191
        %v2194 = vmul.f32 %v2178, %v2192
        %v2195 = vlaneseq
        %v2196 = vshrl.u32 %v2195, 7
        %v2197 = vsub.s32 6, %v2196
        %v2198 = vrot.slane %v396, %v2197
        %v2199 = vmul.f32 %v2193, %v2198
        %v2200 = vmul.f32 %v2194, %v2198
        %v2201 = vlaneseq
        %v2202 = vshrl.u32 %v2201, 7
        %v2203 = vsub.s32 7, %v2202
        %v2204 = vrot.slane %v396, %v2203
        %v2205 = vadd.f32 %v2199, %v2204
        %v2206 = vadd.f32 %v2200, %v2204
        %p2207 = scmp.ne.s32.totalorder %s24, 1
        // Predicated region
        $region53: #{tpu_custom_call.1} parent=47 // pred_check
          %p2208 = pneg %p2207
        $region54: #{tpu_custom_call.1} parent=47 // pred_check_branch
          %2210 = sbr.rel (%p2208) target = $region56
        $region55: #{tpu_custom_call.1} parent=47 // pred_region
          %2211 = vst.msk [vmem:[#allocation2] sm:$0xff] %vm405, %v2205
          %2212 = vst.msk [vmem:[#allocation2 + $0x8] sm:$0xff] %vm405, %v2206
        $region56: #{tpu_custom_call.1} parent=47 // pred_fallthru
          _
        %p2213 = scmp.eq.s32.totalorder %s24, 1
        // Predicated region
        $region57: #{tpu_custom_call.1} parent=47 // pred_check
          %p2214 = pneg %p2213
        $region58: #{tpu_custom_call.1} parent=47 // pred_check_branch
          %2216 = sbr.rel (%p2214) target = $region60
        $region59: #{tpu_custom_call.1} parent=47 // pred_region
          %2217 = vst.msk [vmem:[#allocation4] sm:$0xff] %vm405, %v2205
          %2218 = vst.msk [vmem:[#allocation4 + $0x8] sm:$0xff] %vm405, %v2206
        $region60: #{tpu_custom_call.1} parent=47 // pred_fallthru
          _
        // Predicated region
        $region61: #{tpu_custom_call.1} parent=47 // pred_check
          %p2219 = pneg %p226
        $region62: #{tpu_custom_call.1} parent=47 // pred_check_branch
          %2221 = sbr.rel (%p2219) target = $region64
        $region63: #{tpu_custom_call.1} parent=47 // pred_region
          %s2222 = smul.u32 2, %s23
          %s2224 = ssub.s32 256, 256
          %2225 = vsyncadd [#allocation5], %s2224
          %s2226 = smul.addr %s2222, 128
          %s2227 = scalar_lea.hbm %s7, %s2226
          %s2228 = sshll.u32 [#allocation4], 4
          %s2229 = int_to_ptr.vmem [resolvable:$true] %s2228
          %2234 = dma.vmem_to_hbm [thread:$0]  %s2229, 256, %s2227, [#allocation5], 128, 128, 8
        $region64: #{tpu_custom_call.1} parent=47 // pred_fallthru
          _
        // Predicated region
        $region65: #{tpu_custom_call.1} parent=47 // pred_check
          %p2235 = pneg %p226
        $region66: #{tpu_custom_call.1} parent=47 // pred_check_branch
          %2237 = sbr.rel (%p2235) target = $region68
        $region67: #{tpu_custom_call.1} parent=47 // pred_region
          %2238 = dma.done [#allocation5], 256
        $region68: #{tpu_custom_call.1} parent=47 // pred_fallthru
          _
      $region48: #{tpu_custom_call.1} parent=5 // pred_fallthru
        _
      %p2239 = scmp.le.s32.totalorder 2, %s14
      // Predicated region
      $region69: #{tpu_custom_call.1} parent=5 // pred_check
        %p2240 = pneg %p2239
      $region70: #{tpu_custom_call.1} parent=5 // pred_check_branch
        %2242 = sbr.rel (%p2240) target = $region72
      $region71: #{tpu_custom_call.1} parent=5 // pred_region
        %s2243 = ssub.s32 %s14, 2
      $region72: #{tpu_custom_call.1} parent=5 // pred_fallthru
        _
    $region6: #{tpu_custom_call.1} parent=1 // loop_footer
      %s18 = sadd.s32 1, %s14
    $region7: #{tpu_custom_call.1} parent=1 // loop_footer_branch
      %13 = sbr.rel target = $region3
    $region8: #{tpu_custom_call.1} parent=1 // loop_exit
      _
    %2244 = vsyncpa [#allocation5], 1
    %s2245 = scalar_lea.sflag [#allocation5], 1
    %2246 = vsyncpa %s2245, 1

</llo_original>
